<compile_context>
chip_gen: v6e
topology: v6e:2x2x1
jax: 0.10.0
libtpu: 0.0.40
codegen_flags: <defaults>
</compile_context>

<pallas_src>
import jax
import jax.numpy as jnp
from jax.experimental import pallas as pl
from jax.experimental.pallas import tpu as pltpu


def ncm_kernel(x_ref, w_ih_ref, w_hh_ref, b_ih_ref, b_hh_ref,
               w_out_ref, b_out_ref,
               logits_ref, hstate_ref,
               hs_ref):
    """Whole NCM GRU + output head in one invocation.

    x_ref:      (B, S, 3E)  concatenated embeddings (batch-major, no transpose)
    w_ih_ref:   (3E, 3H)    input->gates weights (r|z|n order, PyTorch)
    w_hh_ref:   (H, 3H)     hidden->gates weights
    b_ih_ref:   (1, 3H)
    b_hh_ref:   (1, 3H)
    w_out_ref:  (1, H)      output linear weight (nn.Linear layout: (out, in))
    b_out_ref:  (1, 1)
    logits_ref: (S, B)      sigmoid(linear(h_t)) for all timesteps (one store)
    hstate_ref: (B, H)      final hidden state (one store)
    hs_ref:     (S, B, H)   VMEM scratch holding every h_t
    """
    B, S, IN = x_ref.shape
    H = w_hh_ref.shape[0]

    # ---- hoisted input projection: all timesteps in one MXU matmul ----
    x_2d = x_ref[...].reshape(B * S, IN)                          # (B*S, 3E)
    gi = jnp.dot(x_2d, w_ih_ref[...],
                 preferred_element_type=jnp.float32) + b_ih_ref[...]
    gi = gi.reshape(B, S, 3 * H)                                  # (B, S, 3H)

    w_hh = w_hh_ref[...]
    b_hh = b_hh_ref[...]

    # ---- sequential GRU recurrence (statically unrolled; S is small) ----
    h = jnp.zeros((B, H), jnp.float32)
    for t in range(S):
        gi_t = gi[:, t, :]                                        # (B, 3H) static slice
        gh = jnp.dot(h, w_hh,
                     preferred_element_type=jnp.float32) + b_hh   # (B, 3H)
        # fused sigmoid on the first 2H lanes: r|z gates together
        rz = jax.nn.sigmoid(gi_t[:, :2 * H] + gh[:, :2 * H])
        r = rz[:, :H]
        z = rz[:, H:]
        n = jnp.tanh(gi_t[:, 2 * H:] + r * gh[:, 2 * H:])
        h = (1.0 - z) * n + z * h
        hs_ref[t] = h                                             # stash h_t (static store)

    hstate_ref[...] = h                                           # final state, written once

    # ---- batched output head: dropout == identity, linear + sigmoid ----
    # One (S,B,H) * (1,1,H) VPU multiply + lane reduce instead of S thin
    # (B,H)@(H,1) MXU matmuls and S masked per-step stores.
    h_all = hs_ref[...]                                           # (S, B, H)
    w_vec = w_out_ref[...].reshape(1, 1, H)
    logits_ref[...] = jax.nn.sigmoid(
        jnp.sum(h_all * w_vec, axis=-1) + b_out_ref[...])         # (S, B)


def ncm_forward(query, doc, vtype, action, params):
    """Pure-JAX glue (embedding gathers + concat) + single Pallas kernel.

    query, doc, vtype, action: (B, S) int32
    Returns (logits, gru_state) matching the PyTorch module:
      logits:    (B, S-1) if S > 1 else (B, S)
      gru_state: (1, B, H)
    """
    B, S = query.shape

    q_e = jnp.take(params["query_embedding"], query, axis=0)     # (B, S, E)
    d_e = jnp.take(params["doc_embedding"], doc, axis=0)         # (B, S, E)
    v_e = jnp.take(params["vtype_embedding"], vtype, axis=0)     # (B, S, E/2)
    a_e = jnp.take(params["action_embedding"], action, axis=0)   # (B, S, E/2)
    gru_input = jnp.concatenate([q_e, d_e, v_e, a_e], axis=2)    # (B, S, 3E)

    IN = gru_input.shape[-1]
    Hh = params["w_hh"].shape[0]

    w_ih = params["w_ih"]                       # (3E, 3H)
    w_hh = params["w_hh"]                       # (H, 3H)
    b_ih = params["b_ih"].reshape(1, 3 * Hh)    # (1, 3H)
    b_hh = params["b_hh"].reshape(1, 3 * Hh)    # (1, 3H)
    w_out = params["w_out"].reshape(1, Hh)      # (1, H)
    b_out = params["b_out"].reshape(1, 1)       # (1, 1)

    grid_spec = pltpu.PrefetchScalarGridSpec(
        num_scalar_prefetch=0,
        grid=(1,),                               # single invocation: loop is in-kernel
        in_specs=[
            pl.BlockSpec((B, S, IN), lambda i: (0, 0, 0)),   # full activation slab
            pl.BlockSpec((IN, 3 * Hh), lambda i: (0, 0)),    # w_ih
            pl.BlockSpec((Hh, 3 * Hh), lambda i: (0, 0)),    # w_hh
            pl.BlockSpec((1, 3 * Hh), lambda i: (0, 0)),     # b_ih
            pl.BlockSpec((1, 3 * Hh), lambda i: (0, 0)),     # b_hh
            pl.BlockSpec((1, Hh), lambda i: (0, 0)),         # w_out
            pl.BlockSpec((1, 1), lambda i: (0, 0)),          # b_out
        ],
        out_specs=[
            pl.BlockSpec((S, B), lambda i: (0, 0)),          # all logits, one store
            pl.BlockSpec((B, Hh), lambda i: (0, 0)),         # final hidden state
        ],
        scratch_shapes=[pltpu.VMEM((S, B, Hh), jnp.float32)],
    )

    logits_sb, h_final = pl.pallas_call(
        ncm_kernel,
        out_shape=(
            jax.ShapeDtypeStruct((S, B), jnp.float32),
            jax.ShapeDtypeStruct((B, Hh), jnp.float32),
        ),
        grid_spec=grid_spec,
        compiler_params=pltpu.CompilerParams(
            dimension_semantics=("arbitrary",)),
    )(gru_input, w_ih, w_hh, b_ih, b_hh, w_out, b_out)

    logits = jnp.transpose(logits_sb, (1, 0))                 # (B, S); tiny
    if S > 1:
        logits = logits[:, 1:]
    gru_state = h_final[None, :, :]                           # (1, B, H)
    return logits, gru_state


def init_params(key, query_size, doc_size, vtype_size, embed_size, hidden_size):
    ks = jax.random.split(key, 10)
    E, H = embed_size, hidden_size
    scale = 0.1
    return {
        "query_embedding": scale * jax.random.normal(ks[0], (query_size, E), jnp.float32),
        "doc_embedding":   scale * jax.random.normal(ks[1], (doc_size, E), jnp.float32),
        "vtype_embedding": scale * jax.random.normal(ks[2], (vtype_size, E // 2), jnp.float32),
        "action_embedding": scale * jax.random.normal(ks[3], (2, E // 2), jnp.float32),
        # GRU: gate order (r | z | n), stored pre-transposed: x @ w_ih, h @ w_hh
        "w_ih": scale * jax.random.normal(ks[4], (3 * E, 3 * H), jnp.float32),
        "w_hh": scale * jax.random.normal(ks[5], (H, 3 * H), jnp.float32),
        "b_ih": scale * jax.random.normal(ks[6], (3 * H,), jnp.float32),
        "b_hh": scale * jax.random.normal(ks[7], (3 * H,), jnp.float32),
        # output_linear: nn.Linear(H, 1) -> weight (1, H), bias (1,)
        "w_out": scale * jax.random.normal(ks[8], (1, H), jnp.float32),
        "b_out": scale * jax.random.normal(ks[9], (1,), jnp.float32),
    }


if __name__ == "__main__":
    # Small deterministic config: embed_size=32, hidden_size=32,
    # query_size=50, doc_size=50, vtype_size=10; batch=2, seq(max_doc_num)=8.
    B, S = 2, 8
    E, H = 32, 32
    QUERY_SIZE, DOC_SIZE, VTYPE_SIZE = 50, 50, 10

    key = jax.random.PRNGKey(0)
    kp, kq, kd, kv, ka = jax.random.split(key, 5)

    params = init_params(kp, QUERY_SIZE, DOC_SIZE, VTYPE_SIZE, E, H)

    query = jax.random.randint(kq, (B, S), 0, QUERY_SIZE, dtype=jnp.int32)
    doc = jax.random.randint(kd, (B, S), 0, DOC_SIZE, dtype=jnp.int32)
    vtype = jax.random.randint(kv, (B, S), 0, VTYPE_SIZE, dtype=jnp.int32)
    action = jax.random.randint(ka, (B, S), 0, 2, dtype=jnp.int32)

    logits, gru_state = ncm_forward(query, doc, vtype, action, params)
    jax.block_until_ready((logits, gru_state))

    assert logits.shape == (B, S - 1), logits.shape
    assert gru_state.shape == (1, B, H), gru_state.shape
    assert bool(jnp.all(jnp.isfinite(logits))) and bool(jnp.all(jnp.isfinite(gru_state)))
    print("KERNEL_OK")
</pallas_src>

<mosaic_0001>
module attributes {stable_mosaic.version = 11 : i64} {
  func.func @ncm_kernel(%arg0: i32, %arg1: memref<2x8x96xf32, #tpu.memory_space<vmem>>, %arg2: memref<96x96xf32, #tpu.memory_space<vmem>>, %arg3: memref<32x96xf32, #tpu.memory_space<vmem>>, %arg4: memref<1x96xf32, #tpu.memory_space<vmem>>, %arg5: memref<1x96xf32, #tpu.memory_space<vmem>>, %arg6: memref<1x32xf32, #tpu.memory_space<vmem>>, %arg7: memref<1x1xf32, #tpu.memory_space<vmem>>, %arg8: memref<8x2xf32, #tpu.memory_space<vmem>>, %arg9: memref<2x32xf32, #tpu.memory_space<vmem>>, %arg10: memref<8x2x32xf32, #tpu.memory_space<vmem>>) attributes {dimension_semantics = [#tpu.dimension_semantics<arbitrary>], iteration_bounds = array<i64: 1>, scalar_prefetch = 0 : i64, scratch_operands = 1 : i64, tpu.core_type = #tpu.core_type<tc>, window_params = [{pipeline_mode = #tpu.pipeline_mode<synchronous>, transform_indices = @transform_0, window_bounds = array<i64: 2, 8, 96>}, {pipeline_mode = #tpu.pipeline_mode<synchronous>, transform_indices = @transform_1, window_bounds = array<i64: 96, 96>}, {pipeline_mode = #tpu.pipeline_mode<synchronous>, transform_indices = @transform_2, window_bounds = array<i64: 32, 96>}, {pipeline_mode = #tpu.pipeline_mode<synchronous>, transform_indices = @transform_3, window_bounds = array<i64: 1, 96>}, {pipeline_mode = #tpu.pipeline_mode<synchronous>, transform_indices = @transform_4, window_bounds = array<i64: 1, 96>}, {pipeline_mode = #tpu.pipeline_mode<synchronous>, transform_indices = @transform_5, window_bounds = array<i64: 1, 32>}, {pipeline_mode = #tpu.pipeline_mode<synchronous>, transform_indices = @transform_6, window_bounds = array<i64: 1, 1>}, {pipeline_mode = #tpu.pipeline_mode<synchronous>, transform_indices = @transform_7, window_bounds = array<i64: 8, 2>}, {pipeline_mode = #tpu.pipeline_mode<synchronous>, transform_indices = @transform_8, window_bounds = array<i64: 2, 32>}]} {
    %c0 = arith.constant 0 : index
    %c0_0 = arith.constant 0 : index
    %c0_1 = arith.constant 0 : index
    %0 = vector.load %arg1[%c0, %c0_0, %c0_1] : memref<2x8x96xf32, #tpu.memory_space<vmem>>, vector<2x8x96xf32>
    %1 = vector.shape_cast %0 : vector<2x8x96xf32> to vector<16x96xf32>
    %c0_2 = arith.constant 0 : index
    %c0_3 = arith.constant 0 : index
    %2 = vector.load %arg2[%c0_2, %c0_3] : memref<96x96xf32, #tpu.memory_space<vmem>>, vector<96x96xf32>
    %cst = arith.constant dense<0.000000e+00> : vector<16x96xf32>
    %3 = tpu.matmul %1, %2, %cst {dimension_numbers = #tpu.dot_dimension_numbers<[1], [0], [0], [1], [0, 0, 1, 1], [], []>} : vector<16x96xf32>, vector<96x96xf32>, vector<16x96xf32> -> vector<16x96xf32>
    %c0_4 = arith.constant 0 : index
    %c0_5 = arith.constant 0 : index
    %4 = vector.load %arg4[%c0_4, %c0_5] : memref<1x96xf32, #tpu.memory_space<vmem>>, vector<1x96xf32>
    %5 = vector.broadcast %4 : vector<1x96xf32> to vector<16x96xf32>
    %6 = arith.addf %3, %5 : vector<16x96xf32>
    %7 = vector.shape_cast %6 : vector<16x96xf32> to vector<2x8x96xf32>
    %c0_6 = arith.constant 0 : index
    %c0_7 = arith.constant 0 : index
    %8 = vector.load %arg3[%c0_6, %c0_7] : memref<32x96xf32, #tpu.memory_space<vmem>>, vector<32x96xf32>
    %c0_8 = arith.constant 0 : index
    %c0_9 = arith.constant 0 : index
    %9 = vector.load %arg5[%c0_8, %c0_9] : memref<1x96xf32, #tpu.memory_space<vmem>>, vector<1x96xf32>
    %cst_10 = arith.constant 0.000000e+00 : f32
    %10 = vector.broadcast %cst_10 : f32 to vector<2x32xf32>
    %11 = vector.extract_strided_slice %7 {offsets = [0, 0, 0], sizes = [2, 1, 96], strides = [1, 1, 1]} : vector<2x8x96xf32> to vector<2x1x96xf32>
    %12 = vector.shape_cast %11 : vector<2x1x96xf32> to vector<2x96xf32>
    %cst_11 = arith.constant dense<0.000000e+00> : vector<2x96xf32>
    %13 = tpu.matmul %10, %8, %cst_11 {dimension_numbers = #tpu.dot_dimension_numbers<[1], [0], [0], [1], [0, 0, 1, 1], [], []>} : vector<2x32xf32>, vector<32x96xf32>, vector<2x96xf32> -> vector<2x96xf32>
    %14 = vector.broadcast %9 : vector<1x96xf32> to vector<2x96xf32>
    %15 = arith.addf %13, %14 : vector<2x96xf32>
    %16 = vector.extract_strided_slice %12 {offsets = [0, 0], sizes = [2, 64], strides = [1, 1]} : vector<2x96xf32> to vector<2x64xf32>
    %17 = vector.extract_strided_slice %15 {offsets = [0, 0], sizes = [2, 64], strides = [1, 1]} : vector<2x96xf32> to vector<2x64xf32>
    %18 = arith.addf %16, %17 : vector<2x64xf32>
    %19 = arith.negf %18 : vector<2x64xf32>
    %20 = math.exp %19 : vector<2x64xf32>
    %cst_12 = arith.constant 1.000000e+00 : f32
    %21 = vector.broadcast %cst_12 : f32 to vector<2x64xf32>
    %22 = arith.addf %21, %20 : vector<2x64xf32>
    %23 = arith.divf %21, %22 : vector<2x64xf32>
    %24 = vector.extract_strided_slice %23 {offsets = [0, 0], sizes = [2, 32], strides = [1, 1]} : vector<2x64xf32> to vector<2x32xf32>
    %25 = vector.extract_strided_slice %23 {offsets = [0, 32], sizes = [2, 32], strides = [1, 1]} : vector<2x64xf32> to vector<2x32xf32>
    %26 = vector.extract_strided_slice %12 {offsets = [0, 64], sizes = [2, 32], strides = [1, 1]} : vector<2x96xf32> to vector<2x32xf32>
    %27 = vector.extract_strided_slice %15 {offsets = [0, 64], sizes = [2, 32], strides = [1, 1]} : vector<2x96xf32> to vector<2x32xf32>
    %28 = arith.mulf %24, %27 : vector<2x32xf32>
    %29 = arith.addf %26, %28 : vector<2x32xf32>
    %30 = math.tanh %29 : vector<2x32xf32>
    %cst_13 = arith.constant 1.000000e+00 : f32
    %31 = vector.broadcast %cst_13 : f32 to vector<2x32xf32>
    %32 = arith.subf %31, %25 : vector<2x32xf32>
    %33 = arith.mulf %32, %30 : vector<2x32xf32>
    %34 = arith.mulf %25, %10 : vector<2x32xf32>
    %35 = arith.addf %33, %34 : vector<2x32xf32>
    %c0_14 = arith.constant 0 : index
    %c0_15 = arith.constant 0 : index
    %c0_16 = arith.constant 0 : index
    %36 = vector.load %arg10[%c0_14, %c0_15, %c0_16] : memref<8x2x32xf32, #tpu.memory_space<vmem>>, vector<1x2x32xf32>
    %37 = vector.shape_cast %36 : vector<1x2x32xf32> to vector<2x32xf32>
    %38 = vector.shape_cast %35 : vector<2x32xf32> to vector<1x2x32xf32>
    tpu.vector_store %arg10[%c0_14, %c0_15, %c0_16], %38 {strides = array<i32>} : memref<8x2x32xf32, #tpu.memory_space<vmem>>, vector<1x2x32xf32>,
    %39 = vector.extract_strided_slice %7 {offsets = [0, 1, 0], sizes = [2, 1, 96], strides = [1, 1, 1]} : vector<2x8x96xf32> to vector<2x1x96xf32>
    %40 = vector.shape_cast %39 : vector<2x1x96xf32> to vector<2x96xf32>
    %cst_17 = arith.constant dense<0.000000e+00> : vector<2x96xf32>
    %41 = tpu.matmul %35, %8, %cst_17 {dimension_numbers = #tpu.dot_dimension_numbers<[1], [0], [0], [1], [0, 0, 1, 1], [], []>} : vector<2x32xf32>, vector<32x96xf32>, vector<2x96xf32> -> vector<2x96xf32>
    %42 = vector.broadcast %9 : vector<1x96xf32> to vector<2x96xf32>
    %43 = arith.addf %41, %42 : vector<2x96xf32>
    %44 = vector.extract_strided_slice %40 {offsets = [0, 0], sizes = [2, 64], strides = [1, 1]} : vector<2x96xf32> to vector<2x64xf32>
    %45 = vector.extract_strided_slice %43 {offsets = [0, 0], sizes = [2, 64], strides = [1, 1]} : vector<2x96xf32> to vector<2x64xf32>
    %46 = arith.addf %44, %45 : vector<2x64xf32>
    %47 = arith.negf %46 : vector<2x64xf32>
    %48 = math.exp %47 : vector<2x64xf32>
    %cst_18 = arith.constant 1.000000e+00 : f32
    %49 = vector.broadcast %cst_18 : f32 to vector<2x64xf32>
    %50 = arith.addf %49, %48 : vector<2x64xf32>
    %51 = arith.divf %49, %50 : vector<2x64xf32>
    %52 = vector.extract_strided_slice %51 {offsets = [0, 0], sizes = [2, 32], strides = [1, 1]} : vector<2x64xf32> to vector<2x32xf32>
    %53 = vector.extract_strided_slice %51 {offsets = [0, 32], sizes = [2, 32], strides = [1, 1]} : vector<2x64xf32> to vector<2x32xf32>
    %54 = vector.extract_strided_slice %40 {offsets = [0, 64], sizes = [2, 32], strides = [1, 1]} : vector<2x96xf32> to vector<2x32xf32>
    %55 = vector.extract_strided_slice %43 {offsets = [0, 64], sizes = [2, 32], strides = [1, 1]} : vector<2x96xf32> to vector<2x32xf32>
    %56 = arith.mulf %52, %55 : vector<2x32xf32>
    %57 = arith.addf %54, %56 : vector<2x32xf32>
    %58 = math.tanh %57 : vector<2x32xf32>
    %cst_19 = arith.constant 1.000000e+00 : f32
    %59 = vector.broadcast %cst_19 : f32 to vector<2x32xf32>
    %60 = arith.subf %59, %53 : vector<2x32xf32>
    %61 = arith.mulf %60, %58 : vector<2x32xf32>
    %62 = arith.mulf %53, %35 : vector<2x32xf32>
    %63 = arith.addf %61, %62 : vector<2x32xf32>
    %c1 = arith.constant 1 : index
    %c0_20 = arith.constant 0 : index
    %c0_21 = arith.constant 0 : index
    %64 = vector.load %arg10[%c1, %c0_20, %c0_21] : memref<8x2x32xf32, #tpu.memory_space<vmem>>, vector<1x2x32xf32>
    %65 = vector.shape_cast %64 : vector<1x2x32xf32> to vector<2x32xf32>
    %66 = vector.shape_cast %63 : vector<2x32xf32> to vector<1x2x32xf32>
    tpu.vector_store %arg10[%c1, %c0_20, %c0_21], %66 {strides = array<i32>} : memref<8x2x32xf32, #tpu.memory_space<vmem>>, vector<1x2x32xf32>,
    %67 = vector.extract_strided_slice %7 {offsets = [0, 2, 0], sizes = [2, 1, 96], strides = [1, 1, 1]} : vector<2x8x96xf32> to vector<2x1x96xf32>
    %68 = vector.shape_cast %67 : vector<2x1x96xf32> to vector<2x96xf32>
    %cst_22 = arith.constant dense<0.000000e+00> : vector<2x96xf32>
    %69 = tpu.matmul %63, %8, %cst_22 {dimension_numbers = #tpu.dot_dimension_numbers<[1], [0], [0], [1], [0, 0, 1, 1], [], []>} : vector<2x32xf32>, vector<32x96xf32>, vector<2x96xf32> -> vector<2x96xf32>
    %70 = vector.broadcast %9 : vector<1x96xf32> to vector<2x96xf32>
    %71 = arith.addf %69, %70 : vector<2x96xf32>
    %72 = vector.extract_strided_slice %68 {offsets = [0, 0], sizes = [2, 64], strides = [1, 1]} : vector<2x96xf32> to vector<2x64xf32>
    %73 = vector.extract_strided_slice %71 {offsets = [0, 0], sizes = [2, 64], strides = [1, 1]} : vector<2x96xf32> to vector<2x64xf32>
    %74 = arith.addf %72, %73 : vector<2x64xf32>
    %75 = arith.negf %74 : vector<2x64xf32>
    %76 = math.exp %75 : vector<2x64xf32>
    %cst_23 = arith.constant 1.000000e+00 : f32
    %77 = vector.broadcast %cst_23 : f32 to vector<2x64xf32>
    %78 = arith.addf %77, %76 : vector<2x64xf32>
    %79 = arith.divf %77, %78 : vector<2x64xf32>
    %80 = vector.extract_strided_slice %79 {offsets = [0, 0], sizes = [2, 32], strides = [1, 1]} : vector<2x64xf32> to vector<2x32xf32>
    %81 = vector.extract_strided_slice %79 {offsets = [0, 32], sizes = [2, 32], strides = [1, 1]} : vector<2x64xf32> to vector<2x32xf32>
    %82 = vector.extract_strided_slice %68 {offsets = [0, 64], sizes = [2, 32], strides = [1, 1]} : vector<2x96xf32> to vector<2x32xf32>
    %83 = vector.extract_strided_slice %71 {offsets = [0, 64], sizes = [2, 32], strides = [1, 1]} : vector<2x96xf32> to vector<2x32xf32>
    %84 = arith.mulf %80, %83 : vector<2x32xf32>
    %85 = arith.addf %82, %84 : vector<2x32xf32>
    %86 = math.tanh %85 : vector<2x32xf32>
    %cst_24 = arith.constant 1.000000e+00 : f32
    %87 = vector.broadcast %cst_24 : f32 to vector<2x32xf32>
    %88 = arith.subf %87, %81 : vector<2x32xf32>
    %89 = arith.mulf %88, %86 : vector<2x32xf32>
    %90 = arith.mulf %81, %63 : vector<2x32xf32>
    %91 = arith.addf %89, %90 : vector<2x32xf32>
    %c2 = arith.constant 2 : index
    %c0_25 = arith.constant 0 : index
    %c0_26 = arith.constant 0 : index
    %92 = vector.load %arg10[%c2, %c0_25, %c0_26] : memref<8x2x32xf32, #tpu.memory_space<vmem>>, vector<1x2x32xf32>
    %93 = vector.shape_cast %92 : vector<1x2x32xf32> to vector<2x32xf32>
    %94 = vector.shape_cast %91 : vector<2x32xf32> to vector<1x2x32xf32>
    tpu.vector_store %arg10[%c2, %c0_25, %c0_26], %94 {strides = array<i32>} : memref<8x2x32xf32, #tpu.memory_space<vmem>>, vector<1x2x32xf32>,
    %95 = vector.extract_strided_slice %7 {offsets = [0, 3, 0], sizes = [2, 1, 96], strides = [1, 1, 1]} : vector<2x8x96xf32> to vector<2x1x96xf32>
    %96 = vector.shape_cast %95 : vector<2x1x96xf32> to vector<2x96xf32>
    %cst_27 = arith.constant dense<0.000000e+00> : vector<2x96xf32>
    %97 = tpu.matmul %91, %8, %cst_27 {dimension_numbers = #tpu.dot_dimension_numbers<[1], [0], [0], [1], [0, 0, 1, 1], [], []>} : vector<2x32xf32>, vector<32x96xf32>, vector<2x96xf32> -> vector<2x96xf32>
    %98 = vector.broadcast %9 : vector<1x96xf32> to vector<2x96xf32>
    %99 = arith.addf %97, %98 : vector<2x96xf32>
    %100 = vector.extract_strided_slice %96 {offsets = [0, 0], sizes = [2, 64], strides = [1, 1]} : vector<2x96xf32> to vector<2x64xf32>
    %101 = vector.extract_strided_slice %99 {offsets = [0, 0], sizes = [2, 64], strides = [1, 1]} : vector<2x96xf32> to vector<2x64xf32>
    %102 = arith.addf %100, %101 : vector<2x64xf32>
    %103 = arith.negf %102 : vector<2x64xf32>
    %104 = math.exp %103 : vector<2x64xf32>
    %cst_28 = arith.constant 1.000000e+00 : f32
    %105 = vector.broadcast %cst_28 : f32 to vector<2x64xf32>
    %106 = arith.addf %105, %104 : vector<2x64xf32>
    %107 = arith.divf %105, %106 : vector<2x64xf32>
    %108 = vector.extract_strided_slice %107 {offsets = [0, 0], sizes = [2, 32], strides = [1, 1]} : vector<2x64xf32> to vector<2x32xf32>
    %109 = vector.extract_strided_slice %107 {offsets = [0, 32], sizes = [2, 32], strides = [1, 1]} : vector<2x64xf32> to vector<2x32xf32>
    %110 = vector.extract_strided_slice %96 {offsets = [0, 64], sizes = [2, 32], strides = [1, 1]} : vector<2x96xf32> to vector<2x32xf32>
    %111 = vector.extract_strided_slice %99 {offsets = [0, 64], sizes = [2, 32], strides = [1, 1]} : vector<2x96xf32> to vector<2x32xf32>
    %112 = arith.mulf %108, %111 : vector<2x32xf32>
    %113 = arith.addf %110, %112 : vector<2x32xf32>
    %114 = math.tanh %113 : vector<2x32xf32>
    %cst_29 = arith.constant 1.000000e+00 : f32
    %115 = vector.broadcast %cst_29 : f32 to vector<2x32xf32>
    %116 = arith.subf %115, %109 : vector<2x32xf32>
    %117 = arith.mulf %116, %114 : vector<2x32xf32>
    %118 = arith.mulf %109, %91 : vector<2x32xf32>
    %119 = arith.addf %117, %118 : vector<2x32xf32>
    %c3 = arith.constant 3 : index
    %c0_30 = arith.constant 0 : index
    %c0_31 = arith.constant 0 : index
    %120 = vector.load %arg10[%c3, %c0_30, %c0_31] : memref<8x2x32xf32, #tpu.memory_space<vmem>>, vector<1x2x32xf32>
    %121 = vector.shape_cast %120 : vector<1x2x32xf32> to vector<2x32xf32>
    %122 = vector.shape_cast %119 : vector<2x32xf32> to vector<1x2x32xf32>
    tpu.vector_store %arg10[%c3, %c0_30, %c0_31], %122 {strides = array<i32>} : memref<8x2x32xf32, #tpu.memory_space<vmem>>, vector<1x2x32xf32>,
    %123 = vector.extract_strided_slice %7 {offsets = [0, 4, 0], sizes = [2, 1, 96], strides = [1, 1, 1]} : vector<2x8x96xf32> to vector<2x1x96xf32>
    %124 = vector.shape_cast %123 : vector<2x1x96xf32> to vector<2x96xf32>
    %cst_32 = arith.constant dense<0.000000e+00> : vector<2x96xf32>
    %125 = tpu.matmul %119, %8, %cst_32 {dimension_numbers = #tpu.dot_dimension_numbers<[1], [0], [0], [1], [0, 0, 1, 1], [], []>} : vector<2x32xf32>, vector<32x96xf32>, vector<2x96xf32> -> vector<2x96xf32>
    %126 = vector.broadcast %9 : vector<1x96xf32> to vector<2x96xf32>
    %127 = arith.addf %125, %126 : vector<2x96xf32>
    %128 = vector.extract_strided_slice %124 {offsets = [0, 0], sizes = [2, 64], strides = [1, 1]} : vector<2x96xf32> to vector<2x64xf32>
    %129 = vector.extract_strided_slice %127 {offsets = [0, 0], sizes = [2, 64], strides = [1, 1]} : vector<2x96xf32> to vector<2x64xf32>
    %130 = arith.addf %128, %129 : vector<2x64xf32>
    %131 = arith.negf %130 : vector<2x64xf32>
    %132 = math.exp %131 : vector<2x64xf32>
    %cst_33 = arith.constant 1.000000e+00 : f32
    %133 = vector.broadcast %cst_33 : f32 to vector<2x64xf32>
    %134 = arith.addf %133, %132 : vector<2x64xf32>
    %135 = arith.divf %133, %134 : vector<2x64xf32>
    %136 = vector.extract_strided_slice %135 {offsets = [0, 0], sizes = [2, 32], strides = [1, 1]} : vector<2x64xf32> to vector<2x32xf32>
    %137 = vector.extract_strided_slice %135 {offsets = [0, 32], sizes = [2, 32], strides = [1, 1]} : vector<2x64xf32> to vector<2x32xf32>
    %138 = vector.extract_strided_slice %124 {offsets = [0, 64], sizes = [2, 32], strides = [1, 1]} : vector<2x96xf32> to vector<2x32xf32>
    %139 = vector.extract_strided_slice %127 {offsets = [0, 64], sizes = [2, 32], strides = [1, 1]} : vector<2x96xf32> to vector<2x32xf32>
    %140 = arith.mulf %136, %139 : vector<2x32xf32>
    %141 = arith.addf %138, %140 : vector<2x32xf32>
    %142 = math.tanh %141 : vector<2x32xf32>
    %cst_34 = arith.constant 1.000000e+00 : f32
    %143 = vector.broadcast %cst_34 : f32 to vector<2x32xf32>
    %144 = arith.subf %143, %137 : vector<2x32xf32>
    %145 = arith.mulf %144, %142 : vector<2x32xf32>
    %146 = arith.mulf %137, %119 : vector<2x32xf32>
    %147 = arith.addf %145, %146 : vector<2x32xf32>
    %c4 = arith.constant 4 : index
    %c0_35 = arith.constant 0 : index
    %c0_36 = arith.constant 0 : index
    %148 = vector.load %arg10[%c4, %c0_35, %c0_36] : memref<8x2x32xf32, #tpu.memory_space<vmem>>, vector<1x2x32xf32>
    %149 = vector.shape_cast %148 : vector<1x2x32xf32> to vector<2x32xf32>
    %150 = vector.shape_cast %147 : vector<2x32xf32> to vector<1x2x32xf32>
    tpu.vector_store %arg10[%c4, %c0_35, %c0_36], %150 {strides = array<i32>} : memref<8x2x32xf32, #tpu.memory_space<vmem>>, vector<1x2x32xf32>,
    %151 = vector.extract_strided_slice %7 {offsets = [0, 5, 0], sizes = [2, 1, 96], strides = [1, 1, 1]} : vector<2x8x96xf32> to vector<2x1x96xf32>
    %152 = vector.shape_cast %151 : vector<2x1x96xf32> to vector<2x96xf32>
    %cst_37 = arith.constant dense<0.000000e+00> : vector<2x96xf32>
    %153 = tpu.matmul %147, %8, %cst_37 {dimension_numbers = #tpu.dot_dimension_numbers<[1], [0], [0], [1], [0, 0, 1, 1], [], []>} : vector<2x32xf32>, vector<32x96xf32>, vector<2x96xf32> -> vector<2x96xf32>
    %154 = vector.broadcast %9 : vector<1x96xf32> to vector<2x96xf32>
    %155 = arith.addf %153, %154 : vector<2x96xf32>
    %156 = vector.extract_strided_slice %152 {offsets = [0, 0], sizes = [2, 64], strides = [1, 1]} : vector<2x96xf32> to vector<2x64xf32>
    %157 = vector.extract_strided_slice %155 {offsets = [0, 0], sizes = [2, 64], strides = [1, 1]} : vector<2x96xf32> to vector<2x64xf32>
    %158 = arith.addf %156, %157 : vector<2x64xf32>
    %159 = arith.negf %158 : vector<2x64xf32>
    %160 = math.exp %159 : vector<2x64xf32>
    %cst_38 = arith.constant 1.000000e+00 : f32
    %161 = vector.broadcast %cst_38 : f32 to vector<2x64xf32>
    %162 = arith.addf %161, %160 : vector<2x64xf32>
    %163 = arith.divf %161, %162 : vector<2x64xf32>
    %164 = vector.extract_strided_slice %163 {offsets = [0, 0], sizes = [2, 32], strides = [1, 1]} : vector<2x64xf32> to vector<2x32xf32>
    %165 = vector.extract_strided_slice %163 {offsets = [0, 32], sizes = [2, 32], strides = [1, 1]} : vector<2x64xf32> to vector<2x32xf32>
    %166 = vector.extract_strided_slice %152 {offsets = [0, 64], sizes = [2, 32], strides = [1, 1]} : vector<2x96xf32> to vector<2x32xf32>
    %167 = vector.extract_strided_slice %155 {offsets = [0, 64], sizes = [2, 32], strides = [1, 1]} : vector<2x96xf32> to vector<2x32xf32>
    %168 = arith.mulf %164, %167 : vector<2x32xf32>
    %169 = arith.addf %166, %168 : vector<2x32xf32>
    %170 = math.tanh %169 : vector<2x32xf32>
    %cst_39 = arith.constant 1.000000e+00 : f32
    %171 = vector.broadcast %cst_39 : f32 to vector<2x32xf32>
    %172 = arith.subf %171, %165 : vector<2x32xf32>
    %173 = arith.mulf %172, %170 : vector<2x32xf32>
    %174 = arith.mulf %165, %147 : vector<2x32xf32>
    %175 = arith.addf %173, %174 : vector<2x32xf32>
    %c5 = arith.constant 5 : index
    %c0_40 = arith.constant 0 : index
    %c0_41 = arith.constant 0 : index
    %176 = vector.load %arg10[%c5, %c0_40, %c0_41] : memref<8x2x32xf32, #tpu.memory_space<vmem>>, vector<1x2x32xf32>
    %177 = vector.shape_cast %176 : vector<1x2x32xf32> to vector<2x32xf32>
    %178 = vector.shape_cast %175 : vector<2x32xf32> to vector<1x2x32xf32>
    tpu.vector_store %arg10[%c5, %c0_40, %c0_41], %178 {strides = array<i32>} : memref<8x2x32xf32, #tpu.memory_space<vmem>>, vector<1x2x32xf32>,
    %179 = vector.extract_strided_slice %7 {offsets = [0, 6, 0], sizes = [2, 1, 96], strides = [1, 1, 1]} : vector<2x8x96xf32> to vector<2x1x96xf32>
    %180 = vector.shape_cast %179 : vector<2x1x96xf32> to vector<2x96xf32>
    %cst_42 = arith.constant dense<0.000000e+00> : vector<2x96xf32>
    %181 = tpu.matmul %175, %8, %cst_42 {dimension_numbers = #tpu.dot_dimension_numbers<[1], [0], [0], [1], [0, 0, 1, 1], [], []>} : vector<2x32xf32>, vector<32x96xf32>, vector<2x96xf32> -> vector<2x96xf32>
    %182 = vector.broadcast %9 : vector<1x96xf32> to vector<2x96xf32>
    %183 = arith.addf %181, %182 : vector<2x96xf32>
    %184 = vector.extract_strided_slice %180 {offsets = [0, 0], sizes = [2, 64], strides = [1, 1]} : vector<2x96xf32> to vector<2x64xf32>
    %185 = vector.extract_strided_slice %183 {offsets = [0, 0], sizes = [2, 64], strides = [1, 1]} : vector<2x96xf32> to vector<2x64xf32>
    %186 = arith.addf %184, %185 : vector<2x64xf32>
    %187 = arith.negf %186 : vector<2x64xf32>
    %188 = math.exp %187 : vector<2x64xf32>
    %cst_43 = arith.constant 1.000000e+00 : f32
    %189 = vector.broadcast %cst_43 : f32 to vector<2x64xf32>
    %190 = arith.addf %189, %188 : vector<2x64xf32>
    %191 = arith.divf %189, %190 : vector<2x64xf32>
    %192 = vector.extract_strided_slice %191 {offsets = [0, 0], sizes = [2, 32], strides = [1, 1]} : vector<2x64xf32> to vector<2x32xf32>
    %193 = vector.extract_strided_slice %191 {offsets = [0, 32], sizes = [2, 32], strides = [1, 1]} : vector<2x64xf32> to vector<2x32xf32>
    %194 = vector.extract_strided_slice %180 {offsets = [0, 64], sizes = [2, 32], strides = [1, 1]} : vector<2x96xf32> to vector<2x32xf32>
    %195 = vector.extract_strided_slice %183 {offsets = [0, 64], sizes = [2, 32], strides = [1, 1]} : vector<2x96xf32> to vector<2x32xf32>
    %196 = arith.mulf %192, %195 : vector<2x32xf32>
    %197 = arith.addf %194, %196 : vector<2x32xf32>
    %198 = math.tanh %197 : vector<2x32xf32>
    %cst_44 = arith.constant 1.000000e+00 : f32
    %199 = vector.broadcast %cst_44 : f32 to vector<2x32xf32>
    %200 = arith.subf %199, %193 : vector<2x32xf32>
    %201 = arith.mulf %200, %198 : vector<2x32xf32>
    %202 = arith.mulf %193, %175 : vector<2x32xf32>
    %203 = arith.addf %201, %202 : vector<2x32xf32>
    %c6 = arith.constant 6 : index
    %c0_45 = arith.constant 0 : index
    %c0_46 = arith.constant 0 : index
    %204 = vector.load %arg10[%c6, %c0_45, %c0_46] : memref<8x2x32xf32, #tpu.memory_space<vmem>>, vector<1x2x32xf32>
    %205 = vector.shape_cast %204 : vector<1x2x32xf32> to vector<2x32xf32>
    %206 = vector.shape_cast %203 : vector<2x32xf32> to vector<1x2x32xf32>
    tpu.vector_store %arg10[%c6, %c0_45, %c0_46], %206 {strides = array<i32>} : memref<8x2x32xf32, #tpu.memory_space<vmem>>, vector<1x2x32xf32>,
    %207 = vector.extract_strided_slice %7 {offsets = [0, 7, 0], sizes = [2, 1, 96], strides = [1, 1, 1]} : vector<2x8x96xf32> to vector<2x1x96xf32>
    %208 = vector.shape_cast %207 : vector<2x1x96xf32> to vector<2x96xf32>
    %cst_47 = arith.constant dense<0.000000e+00> : vector<2x96xf32>
    %209 = tpu.matmul %203, %8, %cst_47 {dimension_numbers = #tpu.dot_dimension_numbers<[1], [0], [0], [1], [0, 0, 1, 1], [], []>} : vector<2x32xf32>, vector<32x96xf32>, vector<2x96xf32> -> vector<2x96xf32>
    %210 = vector.broadcast %9 : vector<1x96xf32> to vector<2x96xf32>
    %211 = arith.addf %209, %210 : vector<2x96xf32>
    %212 = vector.extract_strided_slice %208 {offsets = [0, 0], sizes = [2, 64], strides = [1, 1]} : vector<2x96xf32> to vector<2x64xf32>
    %213 = vector.extract_strided_slice %211 {offsets = [0, 0], sizes = [2, 64], strides = [1, 1]} : vector<2x96xf32> to vector<2x64xf32>
    %214 = arith.addf %212, %213 : vector<2x64xf32>
    %215 = arith.negf %214 : vector<2x64xf32>
    %216 = math.exp %215 : vector<2x64xf32>
    %cst_48 = arith.constant 1.000000e+00 : f32
    %217 = vector.broadcast %cst_48 : f32 to vector<2x64xf32>
    %218 = arith.addf %217, %216 : vector<2x64xf32>
    %219 = arith.divf %217, %218 : vector<2x64xf32>
    %220 = vector.extract_strided_slice %219 {offsets = [0, 0], sizes = [2, 32], strides = [1, 1]} : vector<2x64xf32> to vector<2x32xf32>
    %221 = vector.extract_strided_slice %219 {offsets = [0, 32], sizes = [2, 32], strides = [1, 1]} : vector<2x64xf32> to vector<2x32xf32>
    %222 = vector.extract_strided_slice %208 {offsets = [0, 64], sizes = [2, 32], strides = [1, 1]} : vector<2x96xf32> to vector<2x32xf32>
    %223 = vector.extract_strided_slice %211 {offsets = [0, 64], sizes = [2, 32], strides = [1, 1]} : vector<2x96xf32> to vector<2x32xf32>
    %224 = arith.mulf %220, %223 : vector<2x32xf32>
    %225 = arith.addf %222, %224 : vector<2x32xf32>
    %226 = math.tanh %225 : vector<2x32xf32>
    %cst_49 = arith.constant 1.000000e+00 : f32
    %227 = vector.broadcast %cst_49 : f32 to vector<2x32xf32>
    %228 = arith.subf %227, %221 : vector<2x32xf32>
    %229 = arith.mulf %228, %226 : vector<2x32xf32>
    %230 = arith.mulf %221, %203 : vector<2x32xf32>
    %231 = arith.addf %229, %230 : vector<2x32xf32>
    %c7 = arith.constant 7 : index
    %c0_50 = arith.constant 0 : index
    %c0_51 = arith.constant 0 : index
    %232 = vector.load %arg10[%c7, %c0_50, %c0_51] : memref<8x2x32xf32, #tpu.memory_space<vmem>>, vector<1x2x32xf32>
    %233 = vector.shape_cast %232 : vector<1x2x32xf32> to vector<2x32xf32>
    %234 = vector.shape_cast %231 : vector<2x32xf32> to vector<1x2x32xf32>
    tpu.vector_store %arg10[%c7, %c0_50, %c0_51], %234 {strides = array<i32>} : memref<8x2x32xf32, #tpu.memory_space<vmem>>, vector<1x2x32xf32>,
    %c0_52 = arith.constant 0 : index
    %c0_53 = arith.constant 0 : index
    %235 = vector.load %arg9[%c0_52, %c0_53] : memref<2x32xf32, #tpu.memory_space<vmem>>, vector<2x32xf32>
    tpu.vector_store %arg9[%c0_52, %c0_53], %231 {strides = array<i32>} : memref<2x32xf32, #tpu.memory_space<vmem>>, vector<2x32xf32>,
    %c0_54 = arith.constant 0 : index
    %c0_55 = arith.constant 0 : index
    %c0_56 = arith.constant 0 : index
    %236 = vector.load %arg10[%c0_54, %c0_55, %c0_56] : memref<8x2x32xf32, #tpu.memory_space<vmem>>, vector<8x2x32xf32>
    %c0_57 = arith.constant 0 : index
    %c0_58 = arith.constant 0 : index
    %237 = vector.load %arg6[%c0_57, %c0_58] : memref<1x32xf32, #tpu.memory_space<vmem>>, vector<1x32xf32>
    %238 = vector.shape_cast %237 : vector<1x32xf32> to vector<1x1x32xf32>
    %239 = vector.broadcast %238 : vector<1x1x32xf32> to vector<8x2x32xf32>
    %240 = arith.mulf %236, %239 : vector<8x2x32xf32>
    %cst_59 = arith.constant dense<0.000000e+00> : vector<8x2xf32>
    %241 = vector.multi_reduction <add>, %240, %cst_59 [2] : vector<8x2x32xf32> to vector<8x2xf32>
    %c0_60 = arith.constant 0 : index
    %c0_61 = arith.constant 0 : index
    %242 = vector.load %arg7[%c0_60, %c0_61] : memref<1x1xf32, #tpu.memory_space<vmem>>, vector<1x1xf32>
    %243 = vector.broadcast %242 : vector<1x1xf32> to vector<8x2xf32>
    %244 = arith.addf %241, %243 : vector<8x2xf32>
    %245 = arith.negf %244 : vector<8x2xf32>
    %246 = math.exp %245 : vector<8x2xf32>
    %cst_62 = arith.constant 1.000000e+00 : f32
    %247 = vector.broadcast %cst_62 : f32 to vector<8x2xf32>
    %248 = arith.addf %247, %246 : vector<8x2xf32>
    %249 = arith.divf %247, %248 : vector<8x2xf32>
    %c0_63 = arith.constant 0 : index
    %c0_64 = arith.constant 0 : index
    %250 = vector.load %arg8[%c0_63, %c0_64] : memref<8x2xf32, #tpu.memory_space<vmem>>, vector<8x2xf32>
    tpu.vector_store %arg8[%c0_63, %c0_64], %249 {strides = array<i32>} : memref<8x2xf32, #tpu.memory_space<vmem>>, vector<8x2xf32>,
    return
  }
  func.func @transform_0(%arg0: i32) -> (i32, i32, i32) {
    %c0_i32 = arith.constant 0 : i32
    %c0_i32_0 = arith.constant 0 : i32
    %c0_i32_1 = arith.constant 0 : i32
    %c0_i32_2 = arith.constant 0 : i32
    return %c0_i32, %c0_i32_0, %c0_i32_1 : i32, i32, i32
  }
  func.func @transform_1(%arg0: i32) -> (i32, i32) {
    %c0_i32 = arith.constant 0 : i32
    %c0_i32_0 = arith.constant 0 : i32
    %c0_i32_1 = arith.constant 0 : i32
    return %c0_i32, %c0_i32_0 : i32, i32
  }
  func.func @transform_2(%arg0: i32) -> (i32, i32) {
    %c0_i32 = arith.constant 0 : i32
    %c0_i32_0 = arith.constant 0 : i32
    %c0_i32_1 = arith.constant 0 : i32
    return %c0_i32, %c0_i32_0 : i32, i32
  }
  func.func @transform_3(%arg0: i32) -> (i32, i32) {
    %c0_i32 = arith.constant 0 : i32
    %c0_i32_0 = arith.constant 0 : i32
    %c0_i32_1 = arith.constant 0 : i32
    return %c0_i32, %c0_i32_0 : i32, i32
  }
  func.func @transform_4(%arg0: i32) -> (i32, i32) {
    %c0_i32 = arith.constant 0 : i32
    %c0_i32_0 = arith.constant 0 : i32
    %c0_i32_1 = arith.constant 0 : i32
    return %c0_i32, %c0_i32_0 : i32, i32
  }
  func.func @transform_5(%arg0: i32) -> (i32, i32) {
    %c0_i32 = arith.constant 0 : i32
    %c0_i32_0 = arith.constant 0 : i32
    %c0_i32_1 = arith.constant 0 : i32
    return %c0_i32, %c0_i32_0 : i32, i32
  }
  func.func @transform_6(%arg0: i32) -> (i32, i32) {
    %c0_i32 = arith.constant 0 : i32
    %c0_i32_0 = arith.constant 0 : i32
    %c0_i32_1 = arith.constant 0 : i32
    return %c0_i32, %c0_i32_0 : i32, i32
  }
  func.func @transform_7(%arg0: i32) -> (i32, i32) {
    %c0_i32 = arith.constant 0 : i32
    %c0_i32_0 = arith.constant 0 : i32
    %c0_i32_1 = arith.constant 0 : i32
    return %c0_i32, %c0_i32_0 : i32, i32
  }
  func.func @transform_8(%arg0: i32) -> (i32, i32) {
    %c0_i32 = arith.constant 0 : i32
    %c0_i32_0 = arith.constant 0 : i32
    %c0_i32_1 = arith.constant 0 : i32
    return %c0_i32, %c0_i32_0 : i32, i32
  }
}

</mosaic_0001>

<llo_original>
// kernel: tpu_custom_call.1
$region0: #{tpu_custom_call.1}
  #allocation0 [shape = 'u32[]', space=smem, size = 0x4, offset = 0x4, fixed_abs, tag = 'smem constant byte address 0x4 - core index']
  #allocation1 [shape = 'u32[144,128]{1,0:T(1,128)}', space=vmem, size = 0x12000, scoped, tag = 'internal scratch']
  #allocation2 [shape = 'f32[8,2,32]{2,1,0:T(2,128)}', space=vmem, size = 0x2000, scoped, tag = 'scratch operand']
  #allocation3 [shape = 'f32[1,1]{1,0:T(1,128)S(1)}', space=vmem, size = 0x200, scoped, tag = 'scoped memory for tpu_custom_call.1']
  %s0 = inlined_call_operand.hbm [shape: f32[2,8,96], index: 0, kind: input, shape index: {}]
  %s1 = inlined_call_operand.hbm [shape: f32[96,96], index: 1, kind: input, shape index: {}]
  %s2 = inlined_call_operand.hbm [shape: f32[32,96], index: 2, kind: input, shape index: {}]
  %s3 = inlined_call_operand.vmem [shape: f32[1,96], index: 3, kind: input, shape index: {}]
  %s4 = inlined_call_operand.vmem [shape: f32[1,96], index: 4, kind: input, shape index: {}]
  %s5 = inlined_call_operand.vmem [shape: f32[1,32], index: 5, kind: input, shape index: {}]
  %s6 = inlined_call_operand.<no memory space> [shape: f32[1,1], index: 6, kind: input, shape index: {}]
  %s7 = inlined_call_operand.vmem [shape: f32[8,2], index: 7, kind: output, shape index: {0}]
  %s8 = inlined_call_operand.hbm [shape: f32[2,32], index: 8, kind: output, shape index: {1}]
  %9 = xla_tuple %s7, %s8
  %s10 = sld [smem:[#allocation0]]
  $region58: #{tpu_custom_call.1} parent=0
    _
  %s12 = ssub.s32 1, %s10
  %s13 = scalar_select 0, %s12, %s10
  %v14 = vstv %s6
  %15 = vst [vmem:[#allocation3] sm:$0x1] %v14
  $region1: #{tpu_custom_call.1} parent=0
    #allocation4 [shape = 'u8[8192]{0}', space=vmem, size = 0x2000, scoped, tag = 'input window, operand 0, single buffered']
    #allocation5 [shape = 's32[1]{0}', space=sflag, size = 0x4, scoped, tag = 'scoped memory for tpu_custom_call.1']
    #allocation6 [shape = 's32[1]{0}', space=sflag, size = 0x4, scoped, tag = 'scoped memory for tpu_custom_call.1']
    #allocation7 [shape = 'u8[49152]{0}', space=vmem, size = 0xc000, scoped, tag = 'input window, operand 1, single buffered']
    #allocation8 [shape = 's32[1]{0}', space=sflag, size = 0x4, scoped, tag = 'scoped memory for tpu_custom_call.1']
    #allocation9 [shape = 'u8[16384]{0}', space=vmem, size = 0x4000, scoped, tag = 'input window, operand 2, single buffered']
    #allocation10 [shape = 'u8[1024]{0}', space=vmem, size = 0x400, scoped, tag = 'output window, operand 1, single buffered']
    %16 = vsyncpa [#allocation5], 0
    %17 = vsyncpa [#allocation8], 0
    %18 = vsyncpa [#allocation6], 0
    // Predicated region
    $region2: #{tpu_custom_call.1} parent=1 // pred_check
      _
    $region3: #{tpu_custom_call.1} parent=1 // pred_check_branch
      %20 = sbr.rel (0) target = $region5
    $region4: #{tpu_custom_call.1} parent=1 // pred_region
      %s22 = ssub.s32 256, 256
      %23 = vsyncadd [#allocation5], %s22
      %s24 = sshll.u32 [#allocation4], 4
      %s25 = int_to_ptr.vmem [resolvable:$true] %s24
      %30 = dma.hbm_to_vmem [thread:$0]  %s0, 256, %s25, [#allocation5], 128, 128, 8
    $region5: #{tpu_custom_call.1} parent=1 // pred_fallthru
      _
    // Predicated region
    $region6: #{tpu_custom_call.1} parent=1 // pred_check
      _
    $region7: #{tpu_custom_call.1} parent=1 // pred_check_branch
      %32 = sbr.rel (0) target = $region9
    $region8: #{tpu_custom_call.1} parent=1 // pred_region
      %s34 = ssub.s32 1536, 1536
      %35 = vsyncadd [#allocation8], %s34
      %s36 = sshll.u32 [#allocation7], 4
      %s37 = int_to_ptr.vmem [resolvable:$true] %s36
      %42 = dma.hbm_to_vmem [thread:$0]  %s1, 1536, %s37, [#allocation8], 128, 128, 8
    $region9: #{tpu_custom_call.1} parent=1 // pred_fallthru
      _
    // Predicated region
    $region10: #{tpu_custom_call.1} parent=1 // pred_check
      _
    $region11: #{tpu_custom_call.1} parent=1 // pred_check_branch
      %44 = sbr.rel (0) target = $region13
    $region12: #{tpu_custom_call.1} parent=1 // pred_region
      %s46 = ssub.s32 512, 512
      %47 = vsyncadd [#allocation8], %s46
      %s48 = sshll.u32 [#allocation9], 4
      %s49 = int_to_ptr.vmem [resolvable:$true] %s48
      %54 = dma.hbm_to_vmem [thread:$0]  %s2, 512, %s49, [#allocation8], 128, 128, 8
    $region13: #{tpu_custom_call.1} parent=1 // pred_fallthru
      _
    // Predicated region
    $region14: #{tpu_custom_call.1} parent=1 // pred_check
      _
    $region15: #{tpu_custom_call.1} parent=1 // pred_check_branch
      %56 = sbr.rel (0) target = $region17
    $region16: #{tpu_custom_call.1} parent=1 // pred_region
      _
    $region17: #{tpu_custom_call.1} parent=1 // pred_fallthru
      _
    // Predicated region
    $region18: #{tpu_custom_call.1} parent=1 // pred_check
      _
    $region19: #{tpu_custom_call.1} parent=1 // pred_check_branch
      %58 = sbr.rel (0) target = $region21
    $region20: #{tpu_custom_call.1} parent=1 // pred_region
      _
    $region21: #{tpu_custom_call.1} parent=1 // pred_fallthru
      _
    // Predicated region
    $region22: #{tpu_custom_call.1} parent=1 // pred_check
      _
    $region23: #{tpu_custom_call.1} parent=1 // pred_check_branch
      %60 = sbr.rel (0) target = $region25
    $region24: #{tpu_custom_call.1} parent=1 // pred_region
      _
    $region25: #{tpu_custom_call.1} parent=1 // pred_fallthru
      _
    // Predicated region
    $region26: #{tpu_custom_call.1} parent=1 // pred_check
      _
    $region27: #{tpu_custom_call.1} parent=1 // pred_check_branch
      %62 = sbr.rel (0) target = $region29
    $region28: #{tpu_custom_call.1} parent=1 // pred_region
      _
    $region29: #{tpu_custom_call.1} parent=1 // pred_fallthru
      _
    // Predicated region
    $region30: #{tpu_custom_call.1} parent=1 // pred_check
      _
    $region31: #{tpu_custom_call.1} parent=1 // pred_check_branch
      %64 = sbr.rel (0) target = $region33
    $region32: #{tpu_custom_call.1} parent=1 // pred_region
      %65 = dma.done [#allocation5], 256
    $region33: #{tpu_custom_call.1} parent=1 // pred_fallthru
      _
    // Predicated region
    $region34: #{tpu_custom_call.1} parent=1 // pred_check
      _
    $region35: #{tpu_custom_call.1} parent=1 // pred_check_branch
      %67 = sbr.rel (0) target = $region37
    $region36: #{tpu_custom_call.1} parent=1 // pred_region
      %68 = dma.done [#allocation8], 1536
    $region37: #{tpu_custom_call.1} parent=1 // pred_fallthru
      _
    // Predicated region
    $region38: #{tpu_custom_call.1} parent=1 // pred_check
      _
    $region39: #{tpu_custom_call.1} parent=1 // pred_check_branch
      %70 = sbr.rel (0) target = $region41
    $region40: #{tpu_custom_call.1} parent=1 // pred_region
      %71 = dma.done [#allocation8], 512
    $region41: #{tpu_custom_call.1} parent=1 // pred_fallthru
      _
    %v72 = vld [vmem:[#allocation4] sm:$0xff]
    %v73 = vld [vmem:[#allocation4 + $0x8] sm:$0xff]
    %v74 = vld [vmem:[#allocation7] sm:$0xff]
    %v75 = vld [vmem:[#allocation7 + $0x8] sm:$0xff]
    %v76 = vld [vmem:[#allocation7 + $0x10] sm:$0xff]
    %v77 = vld [vmem:[#allocation7 + $0x18] sm:$0xff]
    %v78 = vld [vmem:[#allocation7 + $0x20] sm:$0xff]
    %v79 = vld [vmem:[#allocation7 + $0x28] sm:$0xff]
    %v80 = vld [vmem:[#allocation7 + $0x30] sm:$0xff]
    %v81 = vld [vmem:[#allocation7 + $0x38] sm:$0xff]
    %v82 = vld [vmem:[#allocation7 + $0x40] sm:$0xff]
    %v83 = vld [vmem:[#allocation7 + $0x48] sm:$0xff]
    %v84 = vld [vmem:[#allocation7 + $0x50] sm:$0xff]
    %v85 = vld [vmem:[#allocation7 + $0x58] sm:$0xff]
    %v86 = vld [vmem:[%s3] sm:$0x1]
    %v88 = vlaneseq
    %v89 = vshrl.u32 %v88, 7
    %v90 = vsub.s32 0, %v89
    %v91 = vrot.slane %v86, %v90
    %vm93 = vcmask 785408
    %v95 = vsel %vm93, %v72, 0
    %v98 = vsel %vm93, %v73, 0
    %100 = vmatprep.subr.mxu0 0.0
    %101 = vmatpush1.msra.mxu0 0.0
    %102 = vmatprep.subr.mxu0 0.0
    %103 = vmatpush1.msra.mxu0 0.0
    %104 = vmatprep.subr.mxu0 0.0
    %105 = vmatpush1.msra.mxu0 0.0
    %106 = vmatprep.subr.mxu0 0.0
    %107 = vmatpush1.msra.mxu0 0.0
    %108 = vmatprep.subr.mxu0 0.0
    %109 = vmatpush1.msra.mxu0 %v85
    %110 = vmatprep.subr.mxu0 0.0
    %111 = vmatpush1.msra.mxu0 %v84
    %112 = vmatprep.subr.mxu0 0.0
    %113 = vmatpush1.msra.mxu0 %v83
    %114 = vmatprep.subr.mxu0 0.0
    %115 = vmatpush1.msra.mxu0 %v82
    %116 = vmatprep.subr.mxu0 0.0
    %117 = vmatpush1.msra.mxu0 %v81
    %118 = vmatprep.subr.mxu0 0.0
    %119 = vmatpush1.msra.mxu0 %v80
    %120 = vmatprep.subr.mxu0 0.0
    %121 = vmatpush1.msra.mxu0 %v79
    %122 = vmatprep.subr.mxu0 0.0
    %123 = vmatpush1.msra.mxu0 %v78
    %124 = vmatprep.subr.mxu0 0.0
    %125 = vmatpush1.msra.mxu0 %v77
    %126 = vmatprep.subr.mxu0 0.0
    %127 = vmatpush1.msra.mxu0 %v76
    %128 = vmatprep.subr.mxu0 0.0
    %129 = vmatpush1.msra.mxu0 %v75
    %130 = vmatprep.subr.mxu0 0.0
    %131 = vmatpush1.msra.mxu0 %v74
    %132 = vmatprep.subr.mxu0 0.0
    %133 = vmatpush2.msra.mxu0 0.0
    %134 = vmatprep.subr.mxu0 0.0
    %135 = vmatpush2.msra.mxu0 0.0
    %136 = vmatprep.subr.mxu0 0.0
    %137 = vmatpush2.msra.mxu0 0.0
    %138 = vmatprep.subr.mxu0 0.0
    %139 = vmatpush2.msra.mxu0 0.0
    %140 = vmatprep.subr.mxu0 0.0
    %141 = vmatpush2.msra.mxu0 0.0
    %142 = vmatprep.subr.mxu0 0.0
    %143 = vmatpush2.msra.mxu0 0.0
    %144 = vmatprep.subr.mxu0 0.0
    %145 = vmatpush2.msra.mxu0 0.0
    %146 = vmatprep.subr.mxu0 0.0
    %147 = vmatpush2.msra.mxu0 0.0
    %148 = vmatprep.subr.mxu0 0.0
    %149 = vmatpush2.msra.mxu0 0.0
    %150 = vmatprep.subr.mxu0 0.0
    %151 = vmatpush2.msra.mxu0 0.0
    %152 = vmatprep.subr.mxu0 0.0
    %153 = vmatpush2.msra.mxu0 0.0
    %154 = vmatprep.subr.mxu0 0.0
    %155 = vmatpush2.msra.mxu0 0.0
    %156 = vmatprep.subr.mxu0 0.0
    %157 = vmatpush2.msra.mxu0 0.0
    %158 = vmatprep.subr.mxu0 0.0
    %159 = vmatpush2.msra.mxu0 0.0
    %160 = vmatprep.subr.mxu0 0.0
    %161 = vmatpush2.msra.mxu0 0.0
    %162 = vmatprep.subr.mxu0 0.0
    %163 = vmatpush2.msra.mxu0 0.0
    %164 = vmatprep.mubr.f32.mxu0 0.0
    %165 = vmatmul.mubr.f32.gmra.mxu0 %v95
    %v166 = vpop.f32.mrf.mxu0
    %v167 = vadd.f32 %v91, %v166
    %v168 = vpop.f32.mrf.mxu0
    %169 = vmatprep.mubr.f32.mxu0 0.0
    %170 = vmatmul.mubr.f32.gmra.mxu0 %v98
    %v171 = vpop.f32.mrf.mxu0
    %v172 = vadd.f32 %v91, %v171
    %v173 = vpop.f32.mrf.mxu0
    %174 = vdwg.mxu0
    %v175 = vld [vmem:[#allocation9] sm:$0xff]
    %v176 = vld [vmem:[#allocation9 + $0x8] sm:$0xff]
    %v177 = vld [vmem:[#allocation9 + $0x10] sm:$0xff]
    %v178 = vld [vmem:[#allocation9 + $0x18] sm:$0xff]
    %v179 = vld [vmem:[%s4] sm:$0x1]
    %v181 = vlaneseq
    %v182 = vshrl.u32 %v181, 7
    %v183 = vsub.s32 0, %v182
    %v184 = vrot.slane %v179, %v183
    %vm186 = vcmask 261120
    %v188 = vsel %vm186, 0.0, 0
    %190 = vmatprep.subr.mxu0 0.0
    %191 = vmatpush1.msra.mxu0 0.0
    %192 = vmatprep.subr.mxu0 0.0
    %193 = vmatpush1.msra.mxu0 0.0
    %194 = vmatprep.subr.mxu0 0.0
    %195 = vmatpush1.msra.mxu0 0.0
    %196 = vmatprep.subr.mxu0 0.0
    %197 = vmatpush1.msra.mxu0 0.0
    %198 = vmatprep.subr.mxu0 0.0
    %199 = vmatpush1.msra.mxu0 0.0
    %200 = vmatprep.subr.mxu0 0.0
    %201 = vmatpush1.msra.mxu0 0.0
    %202 = vmatprep.subr.mxu0 0.0
    %203 = vmatpush1.msra.mxu0 0.0
    %204 = vmatprep.subr.mxu0 0.0
    %205 = vmatpush1.msra.mxu0 0.0
    %206 = vmatprep.subr.mxu0 0.0
    %207 = vmatpush1.msra.mxu0 0.0
    %208 = vmatprep.subr.mxu0 0.0
    %209 = vmatpush1.msra.mxu0 0.0
    %210 = vmatprep.subr.mxu0 0.0
    %211 = vmatpush1.msra.mxu0 0.0
    %212 = vmatprep.subr.mxu0 0.0
    %213 = vmatpush1.msra.mxu0 0.0
    %214 = vmatprep.subr.mxu0 0.0
    %215 = vmatpush1.msra.mxu0 %v178
    %216 = vmatprep.subr.mxu0 0.0
    %217 = vmatpush1.msra.mxu0 %v177
    %218 = vmatprep.subr.mxu0 0.0
    %219 = vmatpush1.msra.mxu0 %v176
    %220 = vmatprep.subr.mxu0 0.0
    %221 = vmatpush1.msra.mxu0 %v175
    %222 = vmatprep.subr.mxu0 0.0
    %223 = vmatpush2.msra.mxu0 0.0
    %224 = vmatprep.subr.mxu0 0.0
    %225 = vmatpush2.msra.mxu0 0.0
    %226 = vmatprep.subr.mxu0 0.0
    %227 = vmatpush2.msra.mxu0 0.0
    %228 = vmatprep.subr.mxu0 0.0
    %229 = vmatpush2.msra.mxu0 0.0
    %230 = vmatprep.subr.mxu0 0.0
    %231 = vmatpush2.msra.mxu0 0.0
    %232 = vmatprep.subr.mxu0 0.0
    %233 = vmatpush2.msra.mxu0 0.0
    %234 = vmatprep.subr.mxu0 0.0
    %235 = vmatpush2.msra.mxu0 0.0
    %236 = vmatprep.subr.mxu0 0.0
    %237 = vmatpush2.msra.mxu0 0.0
    %238 = vmatprep.subr.mxu0 0.0
    %239 = vmatpush2.msra.mxu0 0.0
    %240 = vmatprep.subr.mxu0 0.0
    %241 = vmatpush2.msra.mxu0 0.0
    %242 = vmatprep.subr.mxu0 0.0
    %243 = vmatpush2.msra.mxu0 0.0
    %244 = vmatprep.subr.mxu0 0.0
    %245 = vmatpush2.msra.mxu0 0.0
    %246 = vmatprep.subr.mxu0 0.0
    %247 = vmatpush2.msra.mxu0 0.0
    %248 = vmatprep.subr.mxu0 0.0
    %249 = vmatpush2.msra.mxu0 0.0
    %250 = vmatprep.subr.mxu0 0.0
    %251 = vmatpush2.msra.mxu0 0.0
    %252 = vmatprep.subr.mxu0 0.0
    %253 = vmatpush2.msra.mxu0 0.0
    %254 = vmatprep.mubr.f32.mxu0 0.0
    %255 = vmatmul.mubr.f32.gmra.mxu0 %v188
    %v256 = vpop.f32.mrf.mxu0
    %v257 = vadd.f32 %v184, %v256
    %v258 = vpop.f32.mrf.mxu0
    %259 = vdwg.mxu0
    %v261 = vrot.slane %v257, 1
    %v264 = vadd.f32 %v167, %v257
    %v265 = vadd.f32 %v172, %v261
    %v266 = vxor.u32 %v264, 2147483648
    %v267 = vxor.u32 %v265, 2147483648
    %v268 = vmul.f32 %v266, 1.442695
    %v269 = vpow.pop %v268
    %v270 = vmul.f32 %v267, 1.442695
    %v271 = vpow.pop %v270
    %v272 = vadd.f32 %v269, 1.0
    %v273 = vadd.f32 %v271, 1.0
    %v274 = vrcp.pop %v272
    %v275 = vmul.f32 1.0, %v274
    %v276 = vrcp.pop %v273
    %v277 = vmul.f32 1.0, %v276
    %278 = vrot.lane.b32.xlu0 %v257, 64
    %v279 = vpop.permute.xlu0 %278
    %280 = vrot.lane.b32.xlu0 %v261, 64
    %v281 = vpop.permute.xlu0 %280
    %v284 = vmul.f32 %v275, %v279
    %v285 = vmul.f32 %v277, %v281
    %288 = vrot.lane.b32.xlu0 %v284, 64
    %v289 = vpop.permute.xlu0 %288
    %290 = vrot.lane.b32.xlu0 %v285, 64
    %v291 = vpop.permute.xlu0 %290
    %v294 = vadd.f32 %v167, %v289
    %v295 = vadd.f32 %v172, %v291
    %v296 = vtanh.pop %v294
    %v297 = vtanh.pop %v295
    %v298 = vsub.f32 1.0, %v275
    %v299 = vsub.f32 1.0, %v277
    %302 = vrot.lane.b32.xlu0 %v296, 96
    %v303 = vpop.permute.xlu0 %302
    %304 = vrot.lane.b32.xlu0 %v297, 96
    %v305 = vpop.permute.xlu0 %304
    %v308 = vmul.f32 %v298, %v303
    %v309 = vmul.f32 %v299, %v305
    %v310 = vmul.f32 %v275, 0.0
    %v311 = vmul.f32 %v277, 0.0
    %v312 = vadd.f32 %v308, %v310
    %v313 = vadd.f32 %v309, %v311
    %v316 = vrot.slane %v313, 7
    %vm317 = vcmask 1041409
    %v318 = vsel %vm317, %v316, %v312
    %319 = vrot.lane.b32.xlu0 %v318, 96
    %v320 = vpop.permute.xlu0 %319
    %vm322 = vcmask 254976
    %323 = vst.msk [vmem:[#allocation2] sm:$0x3] %vm322, %v320
    %v324 = vsel %vm186, %v320, 0
    %326 = vmatprep.subr.mxu0 0.0
    %327 = vmatpush1.msra.mxu0 0.0
    %328 = vmatprep.subr.mxu0 0.0
    %329 = vmatpush1.msra.mxu0 0.0
    %330 = vmatprep.subr.mxu0 0.0
    %331 = vmatpush1.msra.mxu0 0.0
    %332 = vmatprep.subr.mxu0 0.0
    %333 = vmatpush1.msra.mxu0 0.0
    %334 = vmatprep.subr.mxu0 0.0
    %335 = vmatpush1.msra.mxu0 0.0
    %336 = vmatprep.subr.mxu0 0.0
    %337 = vmatpush1.msra.mxu0 0.0
    %338 = vmatprep.subr.mxu0 0.0
    %339 = vmatpush1.msra.mxu0 0.0
    %340 = vmatprep.subr.mxu0 0.0
    %341 = vmatpush1.msra.mxu0 0.0
    %342 = vmatprep.subr.mxu0 0.0
    %343 = vmatpush1.msra.mxu0 0.0
    %344 = vmatprep.subr.mxu0 0.0
    %345 = vmatpush1.msra.mxu0 0.0
    %346 = vmatprep.subr.mxu0 0.0
    %347 = vmatpush1.msra.mxu0 0.0
    %348 = vmatprep.subr.mxu0 0.0
    %349 = vmatpush1.msra.mxu0 0.0
    %350 = vmatprep.subr.mxu0 0.0
    %351 = vmatpush1.msra.mxu0 %v178
    %352 = vmatprep.subr.mxu0 0.0
    %353 = vmatpush1.msra.mxu0 %v177
    %354 = vmatprep.subr.mxu0 0.0
    %355 = vmatpush1.msra.mxu0 %v176
    %356 = vmatprep.subr.mxu0 0.0
    %357 = vmatpush1.msra.mxu0 %v175
    %358 = vmatprep.subr.mxu0 0.0
    %359 = vmatpush2.msra.mxu0 0.0
    %360 = vmatprep.subr.mxu0 0.0
    %361 = vmatpush2.msra.mxu0 0.0
    %362 = vmatprep.subr.mxu0 0.0
    %363 = vmatpush2.msra.mxu0 0.0
    %364 = vmatprep.subr.mxu0 0.0
    %365 = vmatpush2.msra.mxu0 0.0
    %366 = vmatprep.subr.mxu0 0.0
    %367 = vmatpush2.msra.mxu0 0.0
    %368 = vmatprep.subr.mxu0 0.0
    %369 = vmatpush2.msra.mxu0 0.0
    %370 = vmatprep.subr.mxu0 0.0
    %371 = vmatpush2.msra.mxu0 0.0
    %372 = vmatprep.subr.mxu0 0.0
    %373 = vmatpush2.msra.mxu0 0.0
    %374 = vmatprep.subr.mxu0 0.0
    %375 = vmatpush2.msra.mxu0 0.0
    %376 = vmatprep.subr.mxu0 0.0
    %377 = vmatpush2.msra.mxu0 0.0
    %378 = vmatprep.subr.mxu0 0.0
    %379 = vmatpush2.msra.mxu0 0.0
    %380 = vmatprep.subr.mxu0 0.0
    %381 = vmatpush2.msra.mxu0 0.0
    %382 = vmatprep.subr.mxu0 0.0
    %383 = vmatpush2.msra.mxu0 0.0
    %384 = vmatprep.subr.mxu0 0.0
    %385 = vmatpush2.msra.mxu0 0.0
    %386 = vmatprep.subr.mxu0 0.0
    %387 = vmatpush2.msra.mxu0 0.0
    %388 = vmatprep.subr.mxu0 0.0
    %389 = vmatpush2.msra.mxu0 0.0
    %390 = vmatprep.mubr.f32.mxu0 0.0
    %391 = vmatmul.mubr.f32.gmra.mxu0 %v324
    %v392 = vpop.f32.mrf.mxu0
    %v393 = vadd.f32 %v184, %v392
    %v394 = vpop.f32.mrf.mxu0
    %395 = vdwg.mxu0
    %v397 = vrot.slane %v393, 7
    %v400 = vadd.f32 %v167, %v397
    %v401 = vadd.f32 %v172, %v393
    %v402 = vxor.u32 %v400, 2147483648
    %v403 = vxor.u32 %v401, 2147483648
    %v404 = vmul.f32 %v402, 1.442695
    %v405 = vpow.pop %v404
    %v406 = vmul.f32 %v403, 1.442695
    %v407 = vpow.pop %v406
    %v408 = vadd.f32 %v405, 1.0
    %v409 = vadd.f32 %v407, 1.0
    %v410 = vrcp.pop %v408
    %v411 = vmul.f32 1.0, %v410
    %v412 = vrcp.pop %v409
    %v413 = vmul.f32 1.0, %v412
    %414 = vrot.lane.b32.xlu0 %v397, 64
    %v415 = vpop.permute.xlu0 %414
    %416 = vrot.lane.b32.xlu0 %v393, 64
    %v417 = vpop.permute.xlu0 %416
    %v420 = vmul.f32 %v411, %v415
    %v421 = vmul.f32 %v413, %v417
    %424 = vrot.lane.b32.xlu0 %v420, 64
    %v425 = vpop.permute.xlu0 %424
    %426 = vrot.lane.b32.xlu0 %v421, 64
    %v427 = vpop.permute.xlu0 %426
    %v430 = vadd.f32 %v167, %v425
    %v431 = vadd.f32 %v172, %v427
    %v432 = vtanh.pop %v430
    %v433 = vtanh.pop %v431
    %v434 = vsub.f32 1.0, %v411
    %v435 = vsub.f32 1.0, %v413
    %438 = vrot.lane.b32.xlu0 %v432, 96
    %v439 = vpop.permute.xlu0 %438
    %440 = vrot.lane.b32.xlu0 %v433, 96
    %v441 = vpop.permute.xlu0 %440
    %v444 = vmul.f32 %v434, %v439
    %v445 = vmul.f32 %v435, %v441
    %v446 = vrot.slane %v312, 7
    %v449 = vmul.f32 %v411, %v446
    %v450 = vmul.f32 %v413, %v316
    %v451 = vadd.f32 %v444, %v449
    %v452 = vadd.f32 %v445, %v450
    %v455 = vrot.slane %v452, 7
    %vm456 = vcmask 1042434
    %v457 = vsel %vm456, %v455, %v451
    %458 = vrot.lane.b32.xlu0 %v457, 96
    %v459 = vpop.permute.xlu0 %458
    %s461 = scalar_lea.vmem [#allocation2], 2
    %vm462 = vcmask 256001
    %463 = vst.msk [vmem:[%s461 - $0x1] sm:$0x6] %vm462, %v459
    %v464 = vrot.slane %v451, 1
    %v465 = vsel %vm317, %v452, %v464
    %466 = vrot.lane.b32.xlu0 %v465, 96
    %v467 = vpop.permute.xlu0 %466
    %v468 = vsel %vm186, %v467, 0
    %470 = vmatprep.subr.mxu0 0.0
    %471 = vmatpush1.msra.mxu0 0.0
    %472 = vmatprep.subr.mxu0 0.0
    %473 = vmatpush1.msra.mxu0 0.0
    %474 = vmatprep.subr.mxu0 0.0
    %475 = vmatpush1.msra.mxu0 0.0
    %476 = vmatprep.subr.mxu0 0.0
    %477 = vmatpush1.msra.mxu0 0.0
    %478 = vmatprep.subr.mxu0 0.0
    %479 = vmatpush1.msra.mxu0 0.0
    %480 = vmatprep.subr.mxu0 0.0
    %481 = vmatpush1.msra.mxu0 0.0
    %482 = vmatprep.subr.mxu0 0.0
    %483 = vmatpush1.msra.mxu0 0.0
    %484 = vmatprep.subr.mxu0 0.0
    %485 = vmatpush1.msra.mxu0 0.0
    %486 = vmatprep.subr.mxu0 0.0
    %487 = vmatpush1.msra.mxu0 0.0
    %488 = vmatprep.subr.mxu0 0.0
    %489 = vmatpush1.msra.mxu0 0.0
    %490 = vmatprep.subr.mxu0 0.0
    %491 = vmatpush1.msra.mxu0 0.0
    %492 = vmatprep.subr.mxu0 0.0
    %493 = vmatpush1.msra.mxu0 0.0
    %494 = vmatprep.subr.mxu0 0.0
    %495 = vmatpush1.msra.mxu0 %v178
    %496 = vmatprep.subr.mxu0 0.0
    %497 = vmatpush1.msra.mxu0 %v177
    %498 = vmatprep.subr.mxu0 0.0
    %499 = vmatpush1.msra.mxu0 %v176
    %500 = vmatprep.subr.mxu0 0.0
    %501 = vmatpush1.msra.mxu0 %v175
    %502 = vmatprep.subr.mxu0 0.0
    %503 = vmatpush2.msra.mxu0 0.0
    %504 = vmatprep.subr.mxu0 0.0
    %505 = vmatpush2.msra.mxu0 0.0
    %506 = vmatprep.subr.mxu0 0.0
    %507 = vmatpush2.msra.mxu0 0.0
    %508 = vmatprep.subr.mxu0 0.0
    %509 = vmatpush2.msra.mxu0 0.0
    %510 = vmatprep.subr.mxu0 0.0
    %511 = vmatpush2.msra.mxu0 0.0
    %512 = vmatprep.subr.mxu0 0.0
    %513 = vmatpush2.msra.mxu0 0.0
    %514 = vmatprep.subr.mxu0 0.0
    %515 = vmatpush2.msra.mxu0 0.0
    %516 = vmatprep.subr.mxu0 0.0
    %517 = vmatpush2.msra.mxu0 0.0
    %518 = vmatprep.subr.mxu0 0.0
    %519 = vmatpush2.msra.mxu0 0.0
    %520 = vmatprep.subr.mxu0 0.0
    %521 = vmatpush2.msra.mxu0 0.0
    %522 = vmatprep.subr.mxu0 0.0
    %523 = vmatpush2.msra.mxu0 0.0
    %524 = vmatprep.subr.mxu0 0.0
    %525 = vmatpush2.msra.mxu0 0.0
    %526 = vmatprep.subr.mxu0 0.0
    %527 = vmatpush2.msra.mxu0 0.0
    %528 = vmatprep.subr.mxu0 0.0
    %529 = vmatpush2.msra.mxu0 0.0
    %530 = vmatprep.subr.mxu0 0.0
    %531 = vmatpush2.msra.mxu0 0.0
    %532 = vmatprep.subr.mxu0 0.0
    %533 = vmatpush2.msra.mxu0 0.0
    %534 = vmatprep.mubr.f32.mxu0 0.0
    %535 = vmatmul.mubr.f32.gmra.mxu0 %v468
    %v536 = vpop.f32.mrf.mxu0
    %v537 = vadd.f32 %v184, %v536
    %v538 = vpop.f32.mrf.mxu0
    %539 = vdwg.mxu0
    %v541 = vrot.slane %v537, 6
    %v542 = vrot.slane %v537, 7
    %v545 = vadd.f32 %v167, %v541
    %v546 = vadd.f32 %v172, %v542
    %v547 = vxor.u32 %v545, 2147483648
    %v548 = vxor.u32 %v546, 2147483648
    %v549 = vmul.f32 %v547, 1.442695
    %v550 = vpow.pop %v549
    %v551 = vmul.f32 %v548, 1.442695
    %v552 = vpow.pop %v551
    %v553 = vadd.f32 %v550, 1.0
    %v554 = vadd.f32 %v552, 1.0
    %v555 = vrcp.pop %v553
    %v556 = vmul.f32 1.0, %v555
    %v557 = vrcp.pop %v554
    %v558 = vmul.f32 1.0, %v557
    %559 = vrot.lane.b32.xlu0 %v541, 64
    %v560 = vpop.permute.xlu0 %559
    %561 = vrot.lane.b32.xlu0 %v542, 64
    %v562 = vpop.permute.xlu0 %561
    %v565 = vmul.f32 %v556, %v560
    %v566 = vmul.f32 %v558, %v562
    %569 = vrot.lane.b32.xlu0 %v565, 64
    %v570 = vpop.permute.xlu0 %569
    %571 = vrot.lane.b32.xlu0 %v566, 64
    %v572 = vpop.permute.xlu0 %571
    %v575 = vadd.f32 %v167, %v570
    %v576 = vadd.f32 %v172, %v572
    %v577 = vtanh.pop %v575
    %v578 = vtanh.pop %v576
    %v579 = vsub.f32 1.0, %v556
    %v580 = vsub.f32 1.0, %v558
    %583 = vrot.lane.b32.xlu0 %v577, 96
    %v584 = vpop.permute.xlu0 %583
    %585 = vrot.lane.b32.xlu0 %v578, 96
    %v586 = vpop.permute.xlu0 %585
    %v589 = vmul.f32 %v579, %v584
    %v590 = vmul.f32 %v580, %v586
    %v591 = vrot.slane %v451, 7
    %v594 = vmul.f32 %v556, %v591
    %v595 = vmul.f32 %v558, %v455
    %v596 = vadd.f32 %v589, %v594
    %v597 = vadd.f32 %v590, %v595
    %v600 = vrot.slane %v597, 7
    %vm601 = vcmask 1043459
    %v602 = vsel %vm601, %v600, %v596
    %603 = vrot.lane.b32.xlu0 %v602, 96
    %v604 = vpop.permute.xlu0 %603
    %s606 = scalar_lea.vmem [#allocation2], 4
    %vm607 = vcmask 257026
    %608 = vst.msk [vmem:[%s606 - $0x2] sm:$0xc] %vm607, %v604
    %v609 = vrot.slane %v596, 2
    %v610 = vrot.slane %v597, 1
    %v611 = vsel %vm317, %v610, %v609
    %612 = vrot.lane.b32.xlu0 %v611, 96
    %v613 = vpop.permute.xlu0 %612
    %v614 = vsel %vm186, %v613, 0
    %616 = vmatprep.subr.mxu0 0.0
    %617 = vmatpush1.msra.mxu0 0.0
    %618 = vmatprep.subr.mxu0 0.0
    %619 = vmatpush1.msra.mxu0 0.0
    %620 = vmatprep.subr.mxu0 0.0
    %621 = vmatpush1.msra.mxu0 0.0
    %622 = vmatprep.subr.mxu0 0.0
    %623 = vmatpush1.msra.mxu0 0.0
    %624 = vmatprep.subr.mxu0 0.0
    %625 = vmatpush1.msra.mxu0 0.0
    %626 = vmatprep.subr.mxu0 0.0
    %627 = vmatpush1.msra.mxu0 0.0
    %628 = vmatprep.subr.mxu0 0.0
    %629 = vmatpush1.msra.mxu0 0.0
    %630 = vmatprep.subr.mxu0 0.0
    %631 = vmatpush1.msra.mxu0 0.0
    %632 = vmatprep.subr.mxu0 0.0
    %633 = vmatpush1.msra.mxu0 0.0
    %634 = vmatprep.subr.mxu0 0.0
    %635 = vmatpush1.msra.mxu0 0.0
    %636 = vmatprep.subr.mxu0 0.0
    %637 = vmatpush1.msra.mxu0 0.0
    %638 = vmatprep.subr.mxu0 0.0
    %639 = vmatpush1.msra.mxu0 0.0
    %640 = vmatprep.subr.mxu0 0.0
    %641 = vmatpush1.msra.mxu0 %v178
    %642 = vmatprep.subr.mxu0 0.0
    %643 = vmatpush1.msra.mxu0 %v177
    %644 = vmatprep.subr.mxu0 0.0
    %645 = vmatpush1.msra.mxu0 %v176
    %646 = vmatprep.subr.mxu0 0.0
    %647 = vmatpush1.msra.mxu0 %v175
    %648 = vmatprep.subr.mxu0 0.0
    %649 = vmatpush2.msra.mxu0 0.0
    %650 = vmatprep.subr.mxu0 0.0
    %651 = vmatpush2.msra.mxu0 0.0
    %652 = vmatprep.subr.mxu0 0.0
    %653 = vmatpush2.msra.mxu0 0.0
    %654 = vmatprep.subr.mxu0 0.0
    %655 = vmatpush2.msra.mxu0 0.0
    %656 = vmatprep.subr.mxu0 0.0
    %657 = vmatpush2.msra.mxu0 0.0
    %658 = vmatprep.subr.mxu0 0.0
    %659 = vmatpush2.msra.mxu0 0.0
    %660 = vmatprep.subr.mxu0 0.0
    %661 = vmatpush2.msra.mxu0 0.0
    %662 = vmatprep.subr.mxu0 0.0
    %663 = vmatpush2.msra.mxu0 0.0
    %664 = vmatprep.subr.mxu0 0.0
    %665 = vmatpush2.msra.mxu0 0.0
    %666 = vmatprep.subr.mxu0 0.0
    %667 = vmatpush2.msra.mxu0 0.0
    %668 = vmatprep.subr.mxu0 0.0
    %669 = vmatpush2.msra.mxu0 0.0
    %670 = vmatprep.subr.mxu0 0.0
    %671 = vmatpush2.msra.mxu0 0.0
    %672 = vmatprep.subr.mxu0 0.0
    %673 = vmatpush2.msra.mxu0 0.0
    %674 = vmatprep.subr.mxu0 0.0
    %675 = vmatpush2.msra.mxu0 0.0
    %676 = vmatprep.subr.mxu0 0.0
    %677 = vmatpush2.msra.mxu0 0.0
    %678 = vmatprep.subr.mxu0 0.0
    %679 = vmatpush2.msra.mxu0 0.0
    %680 = vmatprep.mubr.f32.mxu0 0.0
    %681 = vmatmul.mubr.f32.gmra.mxu0 %v614
    %v682 = vpop.f32.mrf.mxu0
    %v683 = vadd.f32 %v184, %v682
    %v684 = vpop.f32.mrf.mxu0
    %685 = vdwg.mxu0
    %v687 = vrot.slane %v683, 5
    %v688 = vrot.slane %v683, 6
    %v691 = vadd.f32 %v167, %v687
    %v692 = vadd.f32 %v172, %v688
    %v693 = vxor.u32 %v691, 2147483648
    %v694 = vxor.u32 %v692, 2147483648
    %v695 = vmul.f32 %v693, 1.442695
    %v696 = vpow.pop %v695
    %v697 = vmul.f32 %v694, 1.442695
    %v698 = vpow.pop %v697
    %v699 = vadd.f32 %v696, 1.0
    %v700 = vadd.f32 %v698, 1.0
    %v701 = vrcp.pop %v699
    %v702 = vmul.f32 1.0, %v701
    %v703 = vrcp.pop %v700
    %v704 = vmul.f32 1.0, %v703
    %705 = vrot.lane.b32.xlu0 %v687, 64
    %v706 = vpop.permute.xlu0 %705
    %707 = vrot.lane.b32.xlu0 %v688, 64
    %v708 = vpop.permute.xlu0 %707
    %v711 = vmul.f32 %v702, %v706
    %v712 = vmul.f32 %v704, %v708
    %715 = vrot.lane.b32.xlu0 %v711, 64
    %v716 = vpop.permute.xlu0 %715
    %717 = vrot.lane.b32.xlu0 %v712, 64
    %v718 = vpop.permute.xlu0 %717
    %v721 = vadd.f32 %v167, %v716
    %v722 = vadd.f32 %v172, %v718
    %v723 = vtanh.pop %v721
    %v724 = vtanh.pop %v722
    %v725 = vsub.f32 1.0, %v702
    %v726 = vsub.f32 1.0, %v704
    %729 = vrot.lane.b32.xlu0 %v723, 96
    %v730 = vpop.permute.xlu0 %729
    %731 = vrot.lane.b32.xlu0 %v724, 96
    %v732 = vpop.permute.xlu0 %731
    %v735 = vmul.f32 %v725, %v730
    %v736 = vmul.f32 %v726, %v732
    %v737 = vrot.slane %v596, 7
    %v740 = vmul.f32 %v702, %v737
    %v741 = vmul.f32 %v704, %v600
    %v742 = vadd.f32 %v735, %v740
    %v743 = vadd.f32 %v736, %v741
    %v746 = vrot.slane %v743, 7
    %vm747 = vcmask 1044484
    %v748 = vsel %vm747, %v746, %v742
    %749 = vrot.lane.b32.xlu0 %v748, 96
    %v750 = vpop.permute.xlu0 %749
    %s752 = scalar_lea.vmem [#allocation2], 6
    %vm753 = vcmask 258051
    %754 = vst.msk [vmem:[%s752 - $0x3] sm:$0x18] %vm753, %v750
    %v755 = vrot.slane %v742, 3
    %v756 = vrot.slane %v743, 2
    %v757 = vsel %vm317, %v756, %v755
    %758 = vrot.lane.b32.xlu0 %v757, 96
    %v759 = vpop.permute.xlu0 %758
    %v760 = vsel %vm186, %v759, 0
    %762 = vmatprep.subr.mxu0 0.0
    %763 = vmatpush1.msra.mxu0 0.0
    %764 = vmatprep.subr.mxu0 0.0
    %765 = vmatpush1.msra.mxu0 0.0
    %766 = vmatprep.subr.mxu0 0.0
    %767 = vmatpush1.msra.mxu0 0.0
    %768 = vmatprep.subr.mxu0 0.0
    %769 = vmatpush1.msra.mxu0 0.0
    %770 = vmatprep.subr.mxu0 0.0
    %771 = vmatpush1.msra.mxu0 0.0
    %772 = vmatprep.subr.mxu0 0.0
    %773 = vmatpush1.msra.mxu0 0.0
    %774 = vmatprep.subr.mxu0 0.0
    %775 = vmatpush1.msra.mxu0 0.0
    %776 = vmatprep.subr.mxu0 0.0
    %777 = vmatpush1.msra.mxu0 0.0
    %778 = vmatprep.subr.mxu0 0.0
    %779 = vmatpush1.msra.mxu0 0.0
    %780 = vmatprep.subr.mxu0 0.0
    %781 = vmatpush1.msra.mxu0 0.0
    %782 = vmatprep.subr.mxu0 0.0
    %783 = vmatpush1.msra.mxu0 0.0
    %784 = vmatprep.subr.mxu0 0.0
    %785 = vmatpush1.msra.mxu0 0.0
    %786 = vmatprep.subr.mxu0 0.0
    %787 = vmatpush1.msra.mxu0 %v178
    %788 = vmatprep.subr.mxu0 0.0
    %789 = vmatpush1.msra.mxu0 %v177
    %790 = vmatprep.subr.mxu0 0.0
    %791 = vmatpush1.msra.mxu0 %v176
    %792 = vmatprep.subr.mxu0 0.0
    %793 = vmatpush1.msra.mxu0 %v175
    %794 = vmatprep.subr.mxu0 0.0
    %795 = vmatpush2.msra.mxu0 0.0
    %796 = vmatprep.subr.mxu0 0.0
    %797 = vmatpush2.msra.mxu0 0.0
    %798 = vmatprep.subr.mxu0 0.0
    %799 = vmatpush2.msra.mxu0 0.0
    %800 = vmatprep.subr.mxu0 0.0
    %801 = vmatpush2.msra.mxu0 0.0
    %802 = vmatprep.subr.mxu0 0.0
    %803 = vmatpush2.msra.mxu0 0.0
    %804 = vmatprep.subr.mxu0 0.0
    %805 = vmatpush2.msra.mxu0 0.0
    %806 = vmatprep.subr.mxu0 0.0
    %807 = vmatpush2.msra.mxu0 0.0
    %808 = vmatprep.subr.mxu0 0.0
    %809 = vmatpush2.msra.mxu0 0.0
    %810 = vmatprep.subr.mxu0 0.0
    %811 = vmatpush2.msra.mxu0 0.0
    %812 = vmatprep.subr.mxu0 0.0
    %813 = vmatpush2.msra.mxu0 0.0
    %814 = vmatprep.subr.mxu0 0.0
    %815 = vmatpush2.msra.mxu0 0.0
    %816 = vmatprep.subr.mxu0 0.0
    %817 = vmatpush2.msra.mxu0 0.0
    %818 = vmatprep.subr.mxu0 0.0
    %819 = vmatpush2.msra.mxu0 0.0
    %820 = vmatprep.subr.mxu0 0.0
    %821 = vmatpush2.msra.mxu0 0.0
    %822 = vmatprep.subr.mxu0 0.0
    %823 = vmatpush2.msra.mxu0 0.0
    %824 = vmatprep.subr.mxu0 0.0
    %825 = vmatpush2.msra.mxu0 0.0
    %826 = vmatprep.mubr.f32.mxu0 0.0
    %827 = vmatmul.mubr.f32.gmra.mxu0 %v760
    %v828 = vpop.f32.mrf.mxu0
    %v829 = vadd.f32 %v184, %v828
    %v830 = vpop.f32.mrf.mxu0
    %831 = vdwg.mxu0
    %v833 = vrot.slane %v829, 4
    %v834 = vrot.slane %v829, 5
    %v837 = vadd.f32 %v167, %v833
    %v838 = vadd.f32 %v172, %v834
    %v839 = vxor.u32 %v837, 2147483648
    %v840 = vxor.u32 %v838, 2147483648
    %v841 = vmul.f32 %v839, 1.442695
    %v842 = vpow.pop %v841
    %v843 = vmul.f32 %v840, 1.442695
    %v844 = vpow.pop %v843
    %v845 = vadd.f32 %v842, 1.0
    %v846 = vadd.f32 %v844, 1.0
    %v847 = vrcp.pop %v845
    %v848 = vmul.f32 1.0, %v847
    %v849 = vrcp.pop %v846
    %v850 = vmul.f32 1.0, %v849
    %851 = vrot.lane.b32.xlu0 %v833, 64
    %v852 = vpop.permute.xlu0 %851
    %853 = vrot.lane.b32.xlu0 %v834, 64
    %v854 = vpop.permute.xlu0 %853
    %v857 = vmul.f32 %v848, %v852
    %v858 = vmul.f32 %v850, %v854
    %861 = vrot.lane.b32.xlu0 %v857, 64
    %v862 = vpop.permute.xlu0 %861
    %863 = vrot.lane.b32.xlu0 %v858, 64
    %v864 = vpop.permute.xlu0 %863
    %v867 = vadd.f32 %v167, %v862
    %v868 = vadd.f32 %v172, %v864
    %v869 = vtanh.pop %v867
    %v870 = vtanh.pop %v868
    %v871 = vsub.f32 1.0, %v848
    %v872 = vsub.f32 1.0, %v850
    %875 = vrot.lane.b32.xlu0 %v869, 96
    %v876 = vpop.permute.xlu0 %875
    %877 = vrot.lane.b32.xlu0 %v870, 96
    %v878 = vpop.permute.xlu0 %877
    %v881 = vmul.f32 %v871, %v876
    %v882 = vmul.f32 %v872, %v878
    %v883 = vrot.slane %v742, 7
    %v886 = vmul.f32 %v848, %v883
    %v887 = vmul.f32 %v850, %v746
    %v888 = vadd.f32 %v881, %v886
    %v889 = vadd.f32 %v882, %v887
    %v892 = vrot.slane %v889, 7
    %vm893 = vcmask 1045509
    %v894 = vsel %vm893, %v892, %v888
    %895 = vrot.lane.b32.xlu0 %v894, 96
    %v896 = vpop.permute.xlu0 %895
    %s898 = scalar_lea.vmem [#allocation2], 8
    %vm899 = vcmask 259076
    %900 = vst.msk [vmem:[%s898 - $0x4] sm:$0x30] %vm899, %v896
    %v901 = vrot.slane %v888, 4
    %v902 = vrot.slane %v889, 3
    %v903 = vsel %vm317, %v902, %v901
    %904 = vrot.lane.b32.xlu0 %v903, 96
    %v905 = vpop.permute.xlu0 %904
    %v906 = vsel %vm186, %v905, 0
    %908 = vmatprep.subr.mxu0 0.0
    %909 = vmatpush1.msra.mxu0 0.0
    %910 = vmatprep.subr.mxu0 0.0
    %911 = vmatpush1.msra.mxu0 0.0
    %912 = vmatprep.subr.mxu0 0.0
    %913 = vmatpush1.msra.mxu0 0.0
    %914 = vmatprep.subr.mxu0 0.0
    %915 = vmatpush1.msra.mxu0 0.0
    %916 = vmatprep.subr.mxu0 0.0
    %917 = vmatpush1.msra.mxu0 0.0
    %918 = vmatprep.subr.mxu0 0.0
    %919 = vmatpush1.msra.mxu0 0.0
    %920 = vmatprep.subr.mxu0 0.0
    %921 = vmatpush1.msra.mxu0 0.0
    %922 = vmatprep.subr.mxu0 0.0
    %923 = vmatpush1.msra.mxu0 0.0
    %924 = vmatprep.subr.mxu0 0.0
    %925 = vmatpush1.msra.mxu0 0.0
    %926 = vmatprep.subr.mxu0 0.0
    %927 = vmatpush1.msra.mxu0 0.0
    %928 = vmatprep.subr.mxu0 0.0
    %929 = vmatpush1.msra.mxu0 0.0
    %930 = vmatprep.subr.mxu0 0.0
    %931 = vmatpush1.msra.mxu0 0.0
    %932 = vmatprep.subr.mxu0 0.0
    %933 = vmatpush1.msra.mxu0 %v178
    %934 = vmatprep.subr.mxu0 0.0
    %935 = vmatpush1.msra.mxu0 %v177
    %936 = vmatprep.subr.mxu0 0.0
    %937 = vmatpush1.msra.mxu0 %v176
    %938 = vmatprep.subr.mxu0 0.0
    %939 = vmatpush1.msra.mxu0 %v175
    %940 = vmatprep.subr.mxu0 0.0
    %941 = vmatpush2.msra.mxu0 0.0
    %942 = vmatprep.subr.mxu0 0.0
    %943 = vmatpush2.msra.mxu0 0.0
    %944 = vmatprep.subr.mxu0 0.0
    %945 = vmatpush2.msra.mxu0 0.0
    %946 = vmatprep.subr.mxu0 0.0
    %947 = vmatpush2.msra.mxu0 0.0
    %948 = vmatprep.subr.mxu0 0.0
    %949 = vmatpush2.msra.mxu0 0.0
    %950 = vmatprep.subr.mxu0 0.0
    %951 = vmatpush2.msra.mxu0 0.0
    %952 = vmatprep.subr.mxu0 0.0
    %953 = vmatpush2.msra.mxu0 0.0
    %954 = vmatprep.subr.mxu0 0.0
    %955 = vmatpush2.msra.mxu0 0.0
    %956 = vmatprep.subr.mxu0 0.0
    %957 = vmatpush2.msra.mxu0 0.0
    %958 = vmatprep.subr.mxu0 0.0
    %959 = vmatpush2.msra.mxu0 0.0
    %960 = vmatprep.subr.mxu0 0.0
    %961 = vmatpush2.msra.mxu0 0.0
    %962 = vmatprep.subr.mxu0 0.0
    %963 = vmatpush2.msra.mxu0 0.0
    %964 = vmatprep.subr.mxu0 0.0
    %965 = vmatpush2.msra.mxu0 0.0
    %966 = vmatprep.subr.mxu0 0.0
    %967 = vmatpush2.msra.mxu0 0.0
    %968 = vmatprep.subr.mxu0 0.0
    %969 = vmatpush2.msra.mxu0 0.0
    %970 = vmatprep.subr.mxu0 0.0
    %971 = vmatpush2.msra.mxu0 0.0
    %972 = vmatprep.mubr.f32.mxu0 0.0
    %973 = vmatmul.mubr.f32.gmra.mxu0 %v906
    %v974 = vpop.f32.mrf.mxu0
    %v975 = vadd.f32 %v184, %v974
    %v976 = vpop.f32.mrf.mxu0
    %977 = vdwg.mxu0
    %v979 = vrot.slane %v975, 3
    %v980 = vrot.slane %v975, 4
    %v983 = vadd.f32 %v167, %v979
    %v984 = vadd.f32 %v172, %v980
    %v985 = vxor.u32 %v983, 2147483648
    %v986 = vxor.u32 %v984, 2147483648
    %v987 = vmul.f32 %v985, 1.442695
    %v988 = vpow.pop %v987
    %v989 = vmul.f32 %v986, 1.442695
    %v990 = vpow.pop %v989
    %v991 = vadd.f32 %v988, 1.0
    %v992 = vadd.f32 %v990, 1.0
    %v993 = vrcp.pop %v991
    %v994 = vmul.f32 1.0, %v993
    %v995 = vrcp.pop %v992
    %v996 = vmul.f32 1.0, %v995
    %997 = vrot.lane.b32.xlu0 %v979, 64
    %v998 = vpop.permute.xlu0 %997
    %999 = vrot.lane.b32.xlu0 %v980, 64
    %v1000 = vpop.permute.xlu0 %999
    %v1003 = vmul.f32 %v994, %v998
    %v1004 = vmul.f32 %v996, %v1000
    %1007 = vrot.lane.b32.xlu0 %v1003, 64
    %v1008 = vpop.permute.xlu0 %1007
    %1009 = vrot.lane.b32.xlu0 %v1004, 64
    %v1010 = vpop.permute.xlu0 %1009
    %v1013 = vadd.f32 %v167, %v1008
    %v1014 = vadd.f32 %v172, %v1010
    %v1015 = vtanh.pop %v1013
    %v1016 = vtanh.pop %v1014
    %v1017 = vsub.f32 1.0, %v994
    %v1018 = vsub.f32 1.0, %v996
    %1021 = vrot.lane.b32.xlu0 %v1015, 96
    %v1022 = vpop.permute.xlu0 %1021
    %1023 = vrot.lane.b32.xlu0 %v1016, 96
    %v1024 = vpop.permute.xlu0 %1023
    %v1027 = vmul.f32 %v1017, %v1022
    %v1028 = vmul.f32 %v1018, %v1024
    %v1029 = vrot.slane %v888, 7
    %v1032 = vmul.f32 %v994, %v1029
    %v1033 = vmul.f32 %v996, %v892
    %v1034 = vadd.f32 %v1027, %v1032
    %v1035 = vadd.f32 %v1028, %v1033
    %v1038 = vrot.slane %v1035, 7
    %vm1039 = vcmask 1046534
    %v1040 = vsel %vm1039, %v1038, %v1034
    %1041 = vrot.lane.b32.xlu0 %v1040, 96
    %v1042 = vpop.permute.xlu0 %1041
    %s1044 = scalar_lea.vmem [#allocation2], 10
    %vm1045 = vcmask 260101
    %1046 = vst.msk [vmem:[%s1044 - $0x5] sm:$0x60] %vm1045, %v1042
    %v1047 = vrot.slane %v1034, 5
    %v1048 = vrot.slane %v1035, 4
    %v1049 = vsel %vm317, %v1048, %v1047
    %1050 = vrot.lane.b32.xlu0 %v1049, 96
    %v1051 = vpop.permute.xlu0 %1050
    %v1052 = vsel %vm186, %v1051, 0
    %1054 = vmatprep.subr.mxu0 0.0
    %1055 = vmatpush1.msra.mxu0 0.0
    %1056 = vmatprep.subr.mxu0 0.0
    %1057 = vmatpush1.msra.mxu0 0.0
    %1058 = vmatprep.subr.mxu0 0.0
    %1059 = vmatpush1.msra.mxu0 0.0
    %1060 = vmatprep.subr.mxu0 0.0
    %1061 = vmatpush1.msra.mxu0 0.0
    %1062 = vmatprep.subr.mxu0 0.0
    %1063 = vmatpush1.msra.mxu0 0.0
    %1064 = vmatprep.subr.mxu0 0.0
    %1065 = vmatpush1.msra.mxu0 0.0
    %1066 = vmatprep.subr.mxu0 0.0
    %1067 = vmatpush1.msra.mxu0 0.0
    %1068 = vmatprep.subr.mxu0 0.0
    %1069 = vmatpush1.msra.mxu0 0.0
    %1070 = vmatprep.subr.mxu0 0.0
    %1071 = vmatpush1.msra.mxu0 0.0
    %1072 = vmatprep.subr.mxu0 0.0
    %1073 = vmatpush1.msra.mxu0 0.0
    %1074 = vmatprep.subr.mxu0 0.0
    %1075 = vmatpush1.msra.mxu0 0.0
    %1076 = vmatprep.subr.mxu0 0.0
    %1077 = vmatpush1.msra.mxu0 0.0
    %1078 = vmatprep.subr.mxu0 0.0
    %1079 = vmatpush1.msra.mxu0 %v178
    %1080 = vmatprep.subr.mxu0 0.0
    %1081 = vmatpush1.msra.mxu0 %v177
    %1082 = vmatprep.subr.mxu0 0.0
    %1083 = vmatpush1.msra.mxu0 %v176
    %1084 = vmatprep.subr.mxu0 0.0
    %1085 = vmatpush1.msra.mxu0 %v175
    %1086 = vmatprep.subr.mxu0 0.0
    %1087 = vmatpush2.msra.mxu0 0.0
    %1088 = vmatprep.subr.mxu0 0.0
    %1089 = vmatpush2.msra.mxu0 0.0
    %1090 = vmatprep.subr.mxu0 0.0
    %1091 = vmatpush2.msra.mxu0 0.0
    %1092 = vmatprep.subr.mxu0 0.0
    %1093 = vmatpush2.msra.mxu0 0.0
    %1094 = vmatprep.subr.mxu0 0.0
    %1095 = vmatpush2.msra.mxu0 0.0
    %1096 = vmatprep.subr.mxu0 0.0
    %1097 = vmatpush2.msra.mxu0 0.0
    %1098 = vmatprep.subr.mxu0 0.0
    %1099 = vmatpush2.msra.mxu0 0.0
    %1100 = vmatprep.subr.mxu0 0.0
    %1101 = vmatpush2.msra.mxu0 0.0
    %1102 = vmatprep.subr.mxu0 0.0
    %1103 = vmatpush2.msra.mxu0 0.0
    %1104 = vmatprep.subr.mxu0 0.0
    %1105 = vmatpush2.msra.mxu0 0.0
    %1106 = vmatprep.subr.mxu0 0.0
    %1107 = vmatpush2.msra.mxu0 0.0
    %1108 = vmatprep.subr.mxu0 0.0
    %1109 = vmatpush2.msra.mxu0 0.0
    %1110 = vmatprep.subr.mxu0 0.0
    %1111 = vmatpush2.msra.mxu0 0.0
    %1112 = vmatprep.subr.mxu0 0.0
    %1113 = vmatpush2.msra.mxu0 0.0
    %1114 = vmatprep.subr.mxu0 0.0
    %1115 = vmatpush2.msra.mxu0 0.0
    %1116 = vmatprep.subr.mxu0 0.0
    %1117 = vmatpush2.msra.mxu0 0.0
    %1118 = vmatprep.mubr.f32.mxu0 0.0
    %1119 = vmatmul.mubr.f32.gmra.mxu0 %v1052
    %v1120 = vpop.f32.mrf.mxu0
    %v1121 = vadd.f32 %v184, %v1120
    %v1122 = vpop.f32.mrf.mxu0
    %1123 = vdwg.mxu0
    %v1125 = vrot.slane %v1121, 2
    %v1126 = vrot.slane %v1121, 3
    %v1129 = vadd.f32 %v167, %v1125
    %v1130 = vadd.f32 %v172, %v1126
    %v1131 = vxor.u32 %v1129, 2147483648
    %v1132 = vxor.u32 %v1130, 2147483648
    %v1133 = vmul.f32 %v1131, 1.442695
    %v1134 = vpow.pop %v1133
    %v1135 = vmul.f32 %v1132, 1.442695
    %v1136 = vpow.pop %v1135
    %v1137 = vadd.f32 %v1134, 1.0
    %v1138 = vadd.f32 %v1136, 1.0
    %v1139 = vrcp.pop %v1137
    %v1140 = vmul.f32 1.0, %v1139
    %v1141 = vrcp.pop %v1138
    %v1142 = vmul.f32 1.0, %v1141
    %1143 = vrot.lane.b32.xlu0 %v1125, 64
    %v1144 = vpop.permute.xlu0 %1143
    %1145 = vrot.lane.b32.xlu0 %v1126, 64
    %v1146 = vpop.permute.xlu0 %1145
    %v1149 = vmul.f32 %v1140, %v1144
    %v1150 = vmul.f32 %v1142, %v1146
    %1153 = vrot.lane.b32.xlu0 %v1149, 64
    %v1154 = vpop.permute.xlu0 %1153
    %1155 = vrot.lane.b32.xlu0 %v1150, 64
    %v1156 = vpop.permute.xlu0 %1155
    %v1159 = vadd.f32 %v167, %v1154
    %v1160 = vadd.f32 %v172, %v1156
    %v1161 = vtanh.pop %v1159
    %v1162 = vtanh.pop %v1160
    %v1163 = vsub.f32 1.0, %v1140
    %v1164 = vsub.f32 1.0, %v1142
    %1167 = vrot.lane.b32.xlu0 %v1161, 96
    %v1168 = vpop.permute.xlu0 %1167
    %1169 = vrot.lane.b32.xlu0 %v1162, 96
    %v1170 = vpop.permute.xlu0 %1169
    %v1173 = vmul.f32 %v1163, %v1168
    %v1174 = vmul.f32 %v1164, %v1170
    %v1175 = vrot.slane %v1034, 7
    %v1178 = vmul.f32 %v1140, %v1175
    %v1179 = vmul.f32 %v1142, %v1038
    %v1180 = vadd.f32 %v1173, %v1178
    %v1181 = vadd.f32 %v1174, %v1179
    %v1184 = vrot.slane %v1181, 7
    %vm1185 = vcmask 1047559
    %v1186 = vsel %vm1185, %v1184, %v1180
    %1187 = vrot.lane.b32.xlu0 %v1186, 96
    %v1188 = vpop.permute.xlu0 %1187
    %s1190 = scalar_lea.vmem [#allocation2], 12
    %vm1191 = vcmask 261126
    %1192 = vst.msk [vmem:[%s1190 - $0x6] sm:$0xc0] %vm1191, %v1188
    %v1193 = vrot.slane %v1180, 6
    %v1194 = vrot.slane %v1181, 5
    %v1195 = vsel %vm317, %v1194, %v1193
    %1196 = vrot.lane.b32.xlu0 %v1195, 96
    %v1197 = vpop.permute.xlu0 %1196
    %v1198 = vsel %vm186, %v1197, 0
    %1200 = vmatprep.subr.mxu0 0.0
    %1201 = vmatpush1.msra.mxu0 0.0
    %1202 = vmatprep.subr.mxu0 0.0
    %1203 = vmatpush1.msra.mxu0 0.0
    %1204 = vmatprep.subr.mxu0 0.0
    %1205 = vmatpush1.msra.mxu0 0.0
    %1206 = vmatprep.subr.mxu0 0.0
    %1207 = vmatpush1.msra.mxu0 0.0
    %1208 = vmatprep.subr.mxu0 0.0
    %1209 = vmatpush1.msra.mxu0 0.0
    %1210 = vmatprep.subr.mxu0 0.0
    %1211 = vmatpush1.msra.mxu0 0.0
    %1212 = vmatprep.subr.mxu0 0.0
    %1213 = vmatpush1.msra.mxu0 0.0
    %1214 = vmatprep.subr.mxu0 0.0
    %1215 = vmatpush1.msra.mxu0 0.0
    %1216 = vmatprep.subr.mxu0 0.0
    %1217 = vmatpush1.msra.mxu0 0.0
    %1218 = vmatprep.subr.mxu0 0.0
    %1219 = vmatpush1.msra.mxu0 0.0
    %1220 = vmatprep.subr.mxu0 0.0
    %1221 = vmatpush1.msra.mxu0 0.0
    %1222 = vmatprep.subr.mxu0 0.0
    %1223 = vmatpush1.msra.mxu0 0.0
    %1224 = vmatprep.subr.mxu0 0.0
    %1225 = vmatpush1.msra.mxu0 %v178
    %1226 = vmatprep.subr.mxu0 0.0
    %1227 = vmatpush1.msra.mxu0 %v177
    %1228 = vmatprep.subr.mxu0 0.0
    %1229 = vmatpush1.msra.mxu0 %v176
    %1230 = vmatprep.subr.mxu0 0.0
    %1231 = vmatpush1.msra.mxu0 %v175
    %1232 = vmatprep.subr.mxu0 0.0
    %1233 = vmatpush2.msra.mxu0 0.0
    %1234 = vmatprep.subr.mxu0 0.0
    %1235 = vmatpush2.msra.mxu0 0.0
    %1236 = vmatprep.subr.mxu0 0.0
    %1237 = vmatpush2.msra.mxu0 0.0
    %1238 = vmatprep.subr.mxu0 0.0
    %1239 = vmatpush2.msra.mxu0 0.0
    %1240 = vmatprep.subr.mxu0 0.0
    %1241 = vmatpush2.msra.mxu0 0.0
    %1242 = vmatprep.subr.mxu0 0.0
    %1243 = vmatpush2.msra.mxu0 0.0
    %1244 = vmatprep.subr.mxu0 0.0
    %1245 = vmatpush2.msra.mxu0 0.0
    %1246 = vmatprep.subr.mxu0 0.0
    %1247 = vmatpush2.msra.mxu0 0.0
    %1248 = vmatprep.subr.mxu0 0.0
    %1249 = vmatpush2.msra.mxu0 0.0
    %1250 = vmatprep.subr.mxu0 0.0
    %1251 = vmatpush2.msra.mxu0 0.0
    %1252 = vmatprep.subr.mxu0 0.0
    %1253 = vmatpush2.msra.mxu0 0.0
    %1254 = vmatprep.subr.mxu0 0.0
    %1255 = vmatpush2.msra.mxu0 0.0
    %1256 = vmatprep.subr.mxu0 0.0
    %1257 = vmatpush2.msra.mxu0 0.0
    %1258 = vmatprep.subr.mxu0 0.0
    %1259 = vmatpush2.msra.mxu0 0.0
    %1260 = vmatprep.subr.mxu0 0.0
    %1261 = vmatpush2.msra.mxu0 0.0
    %1262 = vmatprep.subr.mxu0 0.0
    %1263 = vmatpush2.msra.mxu0 0.0
    %1264 = vmatprep.mubr.f32.mxu0 0.0
    %1265 = vmatmul.mubr.f32.gmra.mxu0 %v1198
    %v1266 = vpop.f32.mrf.mxu0
    %v1267 = vadd.f32 %v184, %v1266
    %v1268 = vpop.f32.mrf.mxu0
    %1269 = vdwg.mxu0
    %v1271 = vrot.slane %v1267, 1
    %v1272 = vrot.slane %v1267, 2
    %v1275 = vadd.f32 %v167, %v1271
    %v1276 = vadd.f32 %v172, %v1272
    %v1277 = vxor.u32 %v1275, 2147483648
    %v1278 = vxor.u32 %v1276, 2147483648
    %v1279 = vmul.f32 %v1277, 1.442695
    %v1280 = vpow.pop %v1279
    %v1281 = vmul.f32 %v1278, 1.442695
    %v1282 = vpow.pop %v1281
    %v1283 = vadd.f32 %v1280, 1.0
    %v1284 = vadd.f32 %v1282, 1.0
    %v1285 = vrcp.pop %v1283
    %v1286 = vmul.f32 1.0, %v1285
    %v1287 = vrcp.pop %v1284
    %v1288 = vmul.f32 1.0, %v1287
    %1289 = vrot.lane.b32.xlu0 %v1271, 64
    %v1290 = vpop.permute.xlu0 %1289
    %1291 = vrot.lane.b32.xlu0 %v1272, 64
    %v1292 = vpop.permute.xlu0 %1291
    %v1295 = vmul.f32 %v1286, %v1290
    %v1296 = vmul.f32 %v1288, %v1292
    %1299 = vrot.lane.b32.xlu0 %v1295, 64
    %v1300 = vpop.permute.xlu0 %1299
    %1301 = vrot.lane.b32.xlu0 %v1296, 64
    %v1302 = vpop.permute.xlu0 %1301
    %v1305 = vadd.f32 %v167, %v1300
    %v1306 = vadd.f32 %v172, %v1302
    %v1307 = vtanh.pop %v1305
    %v1308 = vtanh.pop %v1306
    %v1309 = vsub.f32 1.0, %v1286
    %v1310 = vsub.f32 1.0, %v1288
    %1313 = vrot.lane.b32.xlu0 %v1307, 96
    %v1314 = vpop.permute.xlu0 %1313
    %1315 = vrot.lane.b32.xlu0 %v1308, 96
    %v1316 = vpop.permute.xlu0 %1315
    %v1319 = vmul.f32 %v1309, %v1314
    %v1320 = vmul.f32 %v1310, %v1316
    %v1321 = vrot.slane %v1180, 7
    %v1324 = vmul.f32 %v1286, %v1321
    %v1325 = vmul.f32 %v1288, %v1184
    %v1326 = vadd.f32 %v1319, %v1324
    %v1327 = vadd.f32 %v1320, %v1325
    %v1330 = vrot.slane %v1327, 7
    %1331 = vrot.lane.b32.xlu0 %v1326, 96
    %v1332 = vpop.permute.xlu0 %1331
    %1333 = vrot.lane.b32.xlu0 %v1330, 96
    %v1334 = vpop.permute.xlu0 %1333
    %s1337 = scalar_lea.vmem [#allocation2], 14
    %vm1338 = vcmask 261127
    %1339 = vst.msk [vmem:[%s1337 - $0x7] sm:$0x80] %vm1338, %v1332
    %vm1340 = vcmask 253952
    %1341 = vst.msk [vmem:[%s1337 + $0x1] sm:$0x1] %vm1340, %v1334
    %1342 = vst.msk [vmem:[#allocation10 - $0x7] sm:$0x80] %vm1338, %v1332
    %1343 = vst.msk [vmem:[#allocation10 + $0x1] sm:$0x1] %vm1340, %v1334
    %v1344 = vld [vmem:[#allocation2] sm:$0x3]
    %v1345 = vld [vmem:[#allocation2 + $0x2] sm:$0x3]
    %v1346 = vld [vmem:[#allocation2 + $0x4] sm:$0x3]
    %v1347 = vld [vmem:[#allocation2 + $0x6] sm:$0x3]
    %v1348 = vld [vmem:[#allocation2 + $0x8] sm:$0x3]
    %v1349 = vld [vmem:[#allocation2 + $0xa] sm:$0x3]
    %v1350 = vld [vmem:[#allocation2 + $0xc] sm:$0x3]
    %v1351 = vld [vmem:[#allocation2 + $0xe] sm:$0x3]
    %v1352 = vld [vmem:[%s5] sm:$0x1]
    %v1354 = vlaneseq
    %v1355 = vshrl.u32 %v1354, 7
    %v1356 = vsub.s32 0, %v1355
    %v1357 = vrot.slane %v1352, %v1356
    %v1359 = vmul.f32 %v1344, %v1357
    %v1360 = vmul.f32 %v1345, %v1357
    %v1361 = vmul.f32 %v1346, %v1357
    %v1362 = vmul.f32 %v1347, %v1357
    %v1363 = vmul.f32 %v1348, %v1357
    %v1364 = vmul.f32 %v1349, %v1357
    %v1365 = vmul.f32 %v1350, %v1357
    %v1366 = vmul.f32 %v1351, %v1357
    %v1367 = vsel %vm322, %v1359, 0.0
    %1368 = vadd.xlane.f32.xlu0 %v1367
    %v1369 = vpop.xlane.xlu0 %1368
    %v1370 = vsel %vm322, %v1360, 0.0
    %1371 = vadd.xlane.f32.xlu0 %v1370
    %v1372 = vpop.xlane.xlu0 %1371
    %v1373 = vsel %vm322, %v1361, 0.0
    %1374 = vadd.xlane.f32.xlu0 %v1373
    %v1375 = vpop.xlane.xlu0 %1374
    %v1376 = vsel %vm322, %v1362, 0.0
    %1377 = vadd.xlane.f32.xlu0 %v1376
    %v1378 = vpop.xlane.xlu0 %1377
    %v1379 = vsel %vm322, %v1363, 0.0
    %1380 = vadd.xlane.f32.xlu0 %v1379
    %v1381 = vpop.xlane.xlu0 %1380
    %v1382 = vsel %vm322, %v1364, 0.0
    %1383 = vadd.xlane.f32.xlu0 %v1382
    %v1384 = vpop.xlane.xlu0 %1383
    %v1385 = vsel %vm322, %v1365, 0.0
    %1386 = vadd.xlane.f32.xlu0 %v1385
    %v1387 = vpop.xlane.xlu0 %1386
    %v1388 = vsel %vm322, %v1366, 0.0
    %1389 = vadd.xlane.f32.xlu0 %v1388
    %v1390 = vpop.xlane.xlu0 %1389
    %v1391 = vld [vmem:[#allocation3] sm:$0x1]
    %v1393 = vlaneseq
    %v1394 = vshrl.u32 %v1393, 7
    %v1395 = vsub.s32 0, %v1394
    %v1396 = vrot.slane %v1391, %v1395
    %1397 = vset.pattern.permute.xlu0 0
    %1398 = vperm.xlu0 %1397, %v1396
    %v1399 = vpop.permute.xlu0 %1398
    %v1401 = vadd.f32 %v1369, %v1399
    %v1402 = vadd.f32 %v1372, %v1399
    %v1403 = vadd.f32 %v1375, %v1399
    %v1404 = vadd.f32 %v1378, %v1399
    %v1405 = vadd.f32 %v1381, %v1399
    %v1406 = vadd.f32 %v1384, %v1399
    %v1407 = vadd.f32 %v1387, %v1399
    %v1408 = vadd.f32 %v1390, %v1399
    %v1409 = vxor.u32 %v1401, 2147483648
    %v1410 = vxor.u32 %v1402, 2147483648
    %v1411 = vxor.u32 %v1403, 2147483648
    %v1412 = vxor.u32 %v1404, 2147483648
    %v1413 = vxor.u32 %v1405, 2147483648
    %v1414 = vxor.u32 %v1406, 2147483648
    %v1415 = vxor.u32 %v1407, 2147483648
    %v1416 = vxor.u32 %v1408, 2147483648
    %v1417 = vmul.f32 %v1409, 1.442695
    %v1418 = vpow.pop %v1417
    %v1419 = vmul.f32 %v1410, 1.442695
    %v1420 = vpow.pop %v1419
    %v1421 = vmul.f32 %v1411, 1.442695
    %v1422 = vpow.pop %v1421
    %v1423 = vmul.f32 %v1412, 1.442695
    %v1424 = vpow.pop %v1423
    %v1425 = vmul.f32 %v1413, 1.442695
    %v1426 = vpow.pop %v1425
    %v1427 = vmul.f32 %v1414, 1.442695
    %v1428 = vpow.pop %v1427
    %v1429 = vmul.f32 %v1415, 1.442695
    %v1430 = vpow.pop %v1429
    %v1431 = vmul.f32 %v1416, 1.442695
    %v1432 = vpow.pop %v1431
    %v1433 = vadd.f32 %v1418, 1.0
    %v1434 = vadd.f32 %v1420, 1.0
    %v1435 = vadd.f32 %v1422, 1.0
    %v1436 = vadd.f32 %v1424, 1.0
    %v1437 = vadd.f32 %v1426, 1.0
    %v1438 = vadd.f32 %v1428, 1.0
    %v1439 = vadd.f32 %v1430, 1.0
    %v1440 = vadd.f32 %v1432, 1.0
    %v1441 = vrcp.pop %v1433
    %v1442 = vmul.f32 1.0, %v1441
    %v1443 = vrcp.pop %v1434
    %v1444 = vmul.f32 1.0, %v1443
    %v1445 = vrcp.pop %v1435
    %v1446 = vmul.f32 1.0, %v1445
    %v1447 = vrcp.pop %v1436
    %v1448 = vmul.f32 1.0, %v1447
    %v1449 = vrcp.pop %v1437
    %v1450 = vmul.f32 1.0, %v1449
    %v1451 = vrcp.pop %v1438
    %v1452 = vmul.f32 1.0, %v1451
    %v1453 = vrcp.pop %v1439
    %v1454 = vmul.f32 1.0, %v1453
    %v1455 = vrcp.pop %v1440
    %v1456 = vmul.f32 1.0, %v1455
    %v1465 = vlaneseq
    %v1466 = vand.u32 %v1465, 127
    %v1467 = vlaneseq
    %v1468 = vshrl.u32 %v1467, 7
    %v1469 = vsub.s32 %v1466, %v1468
    %v1470 = vrot.slane %v1442, %v1469
    %v1471 = vlaneseq
    %v1472 = vshrl.u32 %v1471, 7
    %v1473 = vsub.s32 %v1466, %v1472
    %v1474 = vrot.slane %v1444, %v1473
    %v1475 = vlaneseq
    %v1476 = vshrl.u32 %v1475, 7
    %v1477 = vsub.s32 %v1466, %v1476
    %v1478 = vrot.slane %v1446, %v1477
    %v1479 = vlaneseq
    %v1480 = vshrl.u32 %v1479, 7
    %v1481 = vsub.s32 %v1466, %v1480
    %v1482 = vrot.slane %v1448, %v1481
    %v1483 = vlaneseq
    %v1484 = vshrl.u32 %v1483, 7
    %v1485 = vsub.s32 %v1466, %v1484
    %v1486 = vrot.slane %v1450, %v1485
    %v1487 = vlaneseq
    %v1488 = vshrl.u32 %v1487, 7
    %v1489 = vsub.s32 %v1466, %v1488
    %v1490 = vrot.slane %v1452, %v1489
    %v1491 = vlaneseq
    %v1492 = vshrl.u32 %v1491, 7
    %v1493 = vsub.s32 %v1466, %v1492
    %v1494 = vrot.slane %v1454, %v1493
    %v1495 = vlaneseq
    %v1496 = vshrl.u32 %v1495, 7
    %v1497 = vsub.s32 %v1466, %v1496
    %v1498 = vrot.slane %v1456, %v1497
    %v1499 = vsel %vm317, %v1474, %v1470
    %v1500 = vsel %vm456, %v1478, %v1499
    %v1501 = vsel %vm601, %v1482, %v1500
    %v1502 = vsel %vm747, %v1486, %v1501
    %v1503 = vsel %vm893, %v1490, %v1502
    %v1504 = vsel %vm1039, %v1494, %v1503
    %v1505 = vsel %vm1185, %v1498, %v1504
    %vm1507 = vcmask 15360
    %1508 = vst.msk [vmem:[%s7] sm:$0xff] %vm1507, %v1505
    // Predicated region
    $region42: #{tpu_custom_call.1} parent=1 // pred_check
      _
    $region43: #{tpu_custom_call.1} parent=1 // pred_check_branch
      %1510 = sbr.rel (0) target = $region45
    $region44: #{tpu_custom_call.1} parent=1 // pred_region
      _
    $region45: #{tpu_custom_call.1} parent=1 // pred_fallthru
      _
    // Predicated region
    $region46: #{tpu_custom_call.1} parent=1 // pred_check
      _
    $region47: #{tpu_custom_call.1} parent=1 // pred_check_branch
      %1512 = sbr.rel (0) target = $region49
    $region48: #{tpu_custom_call.1} parent=1 // pred_region
      %s1514 = ssub.s32 32, 32
      %1515 = vsyncadd [#allocation6], %s1514
      %s1517 = sshll.u32 [#allocation10], 4
      %s1518 = int_to_ptr.vmem [resolvable:$true] %s1517
      %1520 = dma.vmem_to_hbm [thread:$0]  %s1518, 32, %s8, [#allocation6]
    $region49: #{tpu_custom_call.1} parent=1 // pred_fallthru
      _
    // Predicated region
    $region50: #{tpu_custom_call.1} parent=1 // pred_check
      _
    $region51: #{tpu_custom_call.1} parent=1 // pred_check_branch
      %1522 = sbr.rel (0) target = $region53
    $region52: #{tpu_custom_call.1} parent=1 // pred_region
      _
    $region53: #{tpu_custom_call.1} parent=1 // pred_fallthru
      _
    // Predicated region
    $region54: #{tpu_custom_call.1} parent=1 // pred_check
      _
    $region55: #{tpu_custom_call.1} parent=1 // pred_check_branch
      %1524 = sbr.rel (0) target = $region57
    $region56: #{tpu_custom_call.1} parent=1 // pred_region
      %1525 = dma.done [#allocation6], 32
    $region57: #{tpu_custom_call.1} parent=1 // pred_fallthru
      _
    %1526 = vsyncpa [#allocation5], 1
    %1527 = vsyncpa [#allocation8], 1
    %1528 = vsyncpa [#allocation6], 1

</llo_original>
